<compile_context>
chip_gen: v6e
topology: v6e:2x2x1
jax: 0.10.0
libtpu: 0.0.40
codegen_flags: <defaults>
</compile_context>

<pallas_src>
import functools

import jax
import jax.numpy as jnp
from jax.experimental import pallas as pl
from jax.experimental.pallas import tpu as pltpu


# ----------------------------------------------------------------------------
# Fused Pallas kernel
# ----------------------------------------------------------------------------
def _cnn_fused_kernel(x_ref,
                      w1_ref, s1_ref, b1_ref,
                      w2_ref, s2_ref, b2_ref,
                      w3_ref, s3_ref, b3_ref,
                      feat_ref, aap_ref,
                      *, kp):
    """Whole CNN forward for the full batch in one kernel invocation.

    x_ref:    (N, C_in, L)      input
    w*_ref:   (C_out, K*C_in)   im2col-reshaped conv weight: w2d[o, t*C_in+c] = w[o, c, t]
    s*_ref:   (C_out, 1)        folded BN scale = gamma / sqrt(var + eps)
    b*_ref:   (C_out, 1)        folded BN shift = beta - mean * scale
    feat_ref: (N, C3, L3)       block3 output (after max pool)
    aap_ref:  (N, C3, F)        AdaptiveAvgPool1d(features_len) output
    kp:       ((K1, pad1), (K2, pad2), (K3, pad3))  static conv geometry
    """
    n = x_ref.shape[0]

    def conv_bn_relu_pool(xs, w_ref, s_ref, b_ref, K, pad):
        # xs: list of N per-batch activations, each (C_in, L) float32.
        c_in, L = xs[0].shape
        L_conv = L + 2 * pad - K + 1          # stride 1
        L_pool = L_conv // 2 + 1              # MaxPool1d(2, 2, padding=1)
        w2d = w_ref[...]                      # (C_out, K*C_in)

        # im2col per batch element; batch concatenated along lanes.
        zpad = jnp.zeros((c_in, pad), jnp.float32)
        cols = []
        for xb in xs:
            xp = jnp.concatenate([zpad, xb, zpad], axis=1)            # (C_in, L + 2*pad)
            cols.append(jnp.concatenate(
                [xp[:, t:t + L_conv] for t in range(K)], axis=0))     # (K*C_in, L_conv)
        xcol = jnp.concatenate(cols, axis=1)                          # (K*C_in, N*L_conv)

        # One MXU matmul for the whole batch.
        y = jnp.dot(w2d, xcol, preferred_element_type=jnp.float32)    # (C_out, N*L_conv)

        # Folded BatchNorm (eval) + ReLU, full width.
        y = jnp.maximum(y * s_ref[...] + b_ref[...], 0.0)

        # MaxPool1d(kernel=2, stride=2, padding=1): window j covers conv positions
        # [2j-1, 2j]; -inf padding means out-of-range taps are ignored.  Columns are
        # combined in registers and each batch element is stored as one dense value.
        outs = []
        for b in range(len(xs)):
            yb = y[:, b * L_conv:(b + 1) * L_conv]
            pooled = [yb[:, 0:1]]                                     # j = 0: only index 0
            for j in range(1, L_pool):
                lo, hi = 2 * j - 1, 2 * j
                if hi < L_conv:
                    pooled.append(jnp.maximum(yb[:, lo:lo + 1], yb[:, hi:hi + 1]))
                else:                                                  # last window, L_conv even
                    pooled.append(yb[:, lo:lo + 1])
            outs.append(jnp.concatenate(pooled, axis=1))              # (C_out, L_pool)
        return outs

    (K1, p1), (K2, p2), (K3, p3) = kp
    h = [x_ref[b].astype(jnp.float32) for b in range(n)]
    h = conv_bn_relu_pool(h, w1_ref, s1_ref, b1_ref, K1, p1)
    # nn.Dropout(configs.dropout) -> identity in eval mode.
    h = conv_bn_relu_pool(h, w2_ref, s2_ref, b2_ref, K2, p2)
    h = conv_bn_relu_pool(h, w3_ref, s3_ref, b3_ref, K3, p3)

    F = aap_ref.shape[2]
    for b in range(n):
        hb = h[b]                                                     # (C3, L3)
        L3 = hb.shape[1]
        feat_ref[b] = hb.astype(feat_ref.dtype)
        bins = []
        for i in range(F):                                            # PyTorch adaptive-pool bins
            s = (i * L3) // F
            e = -(-((i + 1) * L3) // F)
            bins.append(jnp.mean(hb[:, s:e], axis=1, keepdims=True))
        aap_ref[b] = jnp.concatenate(bins, axis=1).astype(aap_ref.dtype)


# ----------------------------------------------------------------------------
# Wrapper (weight layout + single pallas_call)
# ----------------------------------------------------------------------------
def cnn_forward(x, params, cfg):
    """x: (N, C_in, L) float32. Returns (x_flat, x_feat) like CNN.forward (eval mode)."""
    # TODO(synk): configs.stride > 1 for the first conv is not implemented.
    assert cfg["stride"] == 1

    n, _, L = x.shape
    K1, pad1 = cfg["kernel_size"], cfg["kernel_size"] // 2
    K2, pad2 = 8, 4
    K3, pad3 = 8, 4
    c3 = cfg["final_out_channels"]
    F = cfg["features_len"]

    def out_len(Lin, K, pad):                 # conv(stride=1) + MaxPool1d(2, 2, padding=1)
        L_conv = Lin + 2 * pad - K + 1
        return L_conv // 2 + 1

    L1 = out_len(L, K1, pad1)
    L2 = out_len(L1, K2, pad2)
    L3 = out_len(L2, K3, pad3)

    def w_im2col(w):                          # (C_out, C_in, K) -> (C_out, K*C_in)
        co, ci, K = w.shape
        return jnp.transpose(w, (0, 2, 1)).reshape(co, K * ci).astype(jnp.float32)

    def col(v):
        return v.reshape(-1, 1).astype(jnp.float32)

    kernel = functools.partial(_cnn_fused_kernel,
                               kp=((K1, pad1), (K2, pad2), (K3, pad3)))
    vmem = pl.BlockSpec(memory_space=pltpu.MemorySpace.VMEM)

    # Single invocation, no grid: the whole batch is processed in one step
    # (per-step overhead paid once; all intermediates stay in VMEM).
    # NOTE: for large N one would add a batch grid axis marked "parallel"
    # (2 TensorCores on v7x); at N=2 the fused no-grid version is fastest.
    feat, aap = pl.pallas_call(
        kernel,
        out_shape=(jax.ShapeDtypeStruct((n, c3, L3), jnp.float32),
                   jax.ShapeDtypeStruct((n, c3, F), jnp.float32)),
        in_specs=[vmem] * 10,
        out_specs=(vmem, vmem),
    )(x.astype(jnp.float32),
      w_im2col(params["w1"]), col(params["s1"]), col(params["b1"]),
      w_im2col(params["w2"]), col(params["s2"]), col(params["b2"]),
      w_im2col(params["w3"]), col(params["s3"]), col(params["b3"]))

    x_flat = aap.reshape(n, -1)
    return x_flat, feat


# ----------------------------------------------------------------------------
# Pure-JAX reference (for self-check)
# ----------------------------------------------------------------------------
def _ref_block(x, w, scale, shift, pad):
    n = x.shape[0]
    _, _, K = w.shape
    L_conv = x.shape[2] + 2 * pad - K + 1
    xp = jnp.pad(x, ((0, 0), (0, 0), (pad, pad)))
    y = 0.0
    for t in range(K):
        y = y + jnp.einsum("oc,ncl->nol", w[:, :, t], xp[:, :, t:t + L_conv],
                           preferred_element_type=jnp.float32,
                           precision=jax.lax.Precision.HIGHEST)
    y = y * scale[None, :, None] + shift[None, :, None]
    y = jnp.maximum(y, 0.0)
    yp = jnp.pad(y, ((0, 0), (0, 0), (1, 1)), constant_values=-jnp.inf)
    L_pool = L_conv // 2 + 1
    cols = [jnp.max(yp[:, :, 2 * j:2 * j + 2], axis=2) for j in range(L_pool)]
    return jnp.stack(cols, axis=2)


def _ref_aap(x, F):
    L = x.shape[2]
    cols = []
    for i in range(F):
        s = (i * L) // F
        e = -(-((i + 1) * L) // F)
        cols.append(jnp.mean(x[:, :, s:e], axis=2))
    return jnp.stack(cols, axis=2)


def _ref_forward(x, params, cfg):
    x = _ref_block(x, params["w1"], params["s1"], params["b1"], cfg["kernel_size"] // 2)
    x = _ref_block(x, params["w2"], params["s2"], params["b2"], 4)
    x = _ref_block(x, params["w3"], params["s3"], params["b3"], 4)
    x_flat = _ref_aap(x, cfg["features_len"]).reshape(x.shape[0], -1)
    return x_flat, x


# ----------------------------------------------------------------------------
# Deterministic parameter init + run
# ----------------------------------------------------------------------------
def _make_block_params(keys, c_out, c_in, K):
    kw, kg, kb, km, kv = keys
    w = 0.1 * jax.random.normal(kw, (c_out, c_in, K), jnp.float32)
    gamma = 1.0 + 0.1 * jax.random.normal(kg, (c_out,), jnp.float32)
    beta = 0.1 * jax.random.normal(kb, (c_out,), jnp.float32)
    run_mean = 0.1 * jax.random.normal(km, (c_out,), jnp.float32)
    run_var = 0.5 + jax.random.uniform(kv, (c_out,), jnp.float32)
    eps = 1e-5
    scale = gamma / jnp.sqrt(run_var + eps)
    shift = beta - run_mean * scale
    return w, scale, shift


if __name__ == "__main__":
    cfg = dict(input_channels=4, mid_channels=8, final_out_channels=16,
               kernel_size=8, stride=1, dropout=0.2, features_len=2)
    N, L = 2, 32

    key = jax.random.PRNGKey(0)
    kx, k1, k2, k3 = jax.random.split(key, 4)

    w1, s1, b1 = _make_block_params(jax.random.split(k1, 5),
                                    cfg["mid_channels"], cfg["input_channels"],
                                    cfg["kernel_size"])
    w2, s2, b2 = _make_block_params(jax.random.split(k2, 5),
                                    cfg["mid_channels"] * 2, cfg["mid_channels"], 8)
    w3, s3, b3 = _make_block_params(jax.random.split(k3, 5),
                                    cfg["final_out_channels"], cfg["mid_channels"] * 2, 8)
    params = dict(w1=w1, s1=s1, b1=b1, w2=w2, s2=s2, b2=b2, w3=w3, s3=s3, b3=b3)

    x_in = jax.random.normal(kx, (N, cfg["input_channels"], L), jnp.float32)

    x_flat, x_feat = cnn_forward(x_in, params, cfg)
    jax.block_until_ready((x_flat, x_feat))

    # Self-check against the pure-JAX reference (tightened tolerance: only f32
    # MXU rounding should remain).
    ref_flat, ref_feat = _ref_forward(x_in, params, cfg)

    def max_rel_err(a, b):
        return float(jnp.max(jnp.abs(a - b)) / (jnp.max(jnp.abs(b)) + 1e-6))

    assert x_feat.shape == ref_feat.shape and x_flat.shape == ref_flat.shape
    assert max_rel_err(x_feat, ref_feat) < 1e-3, max_rel_err(x_feat, ref_feat)
    assert max_rel_err(x_flat, ref_flat) < 1e-3, max_rel_err(x_flat, ref_flat)

    print("KERNEL_OK")
</pallas_src>

<mosaic_0001>
module attributes {stable_mosaic.version = 11 : i64} {
  func.func @_cnn_fused_kernel(%arg0: memref<2x4x32xf32, #tpu.memory_space<vmem>>, %arg1: memref<8x32xf32, #tpu.memory_space<vmem>>, %arg2: memref<8x1xf32, #tpu.memory_space<vmem>>, %arg3: memref<8x1xf32, #tpu.memory_space<vmem>>, %arg4: memref<16x64xf32, #tpu.memory_space<vmem>>, %arg5: memref<16x1xf32, #tpu.memory_space<vmem>>, %arg6: memref<16x1xf32, #tpu.memory_space<vmem>>, %arg7: memref<16x128xf32, #tpu.memory_space<vmem>>, %arg8: memref<16x1xf32, #tpu.memory_space<vmem>>, %arg9: memref<16x1xf32, #tpu.memory_space<vmem>>, %arg10: memref<2x16x6xf32, #tpu.memory_space<vmem>>, %arg11: memref<2x16x2xf32, #tpu.memory_space<vmem>>) attributes {dimension_semantics = [], scalar_prefetch = 0 : i64, scratch_operands = 0 : i64, tpu.core_type = #tpu.core_type<tc>} {
    %c0 = arith.constant 0 : index
    %c0_0 = arith.constant 0 : index
    %c0_1 = arith.constant 0 : index
    %0 = vector.load %arg0[%c0, %c0_0, %c0_1] : memref<2x4x32xf32, #tpu.memory_space<vmem>>, vector<1x4x32xf32>
    %1 = vector.shape_cast %0 : vector<1x4x32xf32> to vector<4x32xf32>
    %c1 = arith.constant 1 : index
    %c0_2 = arith.constant 0 : index
    %c0_3 = arith.constant 0 : index
    %2 = vector.load %arg0[%c1, %c0_2, %c0_3] : memref<2x4x32xf32, #tpu.memory_space<vmem>>, vector<1x4x32xf32>
    %3 = vector.shape_cast %2 : vector<1x4x32xf32> to vector<4x32xf32>
    %c0_4 = arith.constant 0 : index
    %c0_5 = arith.constant 0 : index
    %4 = vector.load %arg1[%c0_4, %c0_5] : memref<8x32xf32, #tpu.memory_space<vmem>>, vector<8x32xf32>
    %cst = arith.constant 0.000000e+00 : f32
    %5 = vector.broadcast %cst : f32 to vector<4x4xf32>
    %6 = tpu.concatenate %5, %1, %5 in 1 : vector<4x4xf32>, vector<4x32xf32>, vector<4x4xf32> -> vector<4x40xf32>
    %7 = vector.extract_strided_slice %6 {offsets = [0, 0], sizes = [4, 33], strides = [1, 1]} : vector<4x40xf32> to vector<4x33xf32>
    %8 = vector.extract_strided_slice %6 {offsets = [0, 1], sizes = [4, 33], strides = [1, 1]} : vector<4x40xf32> to vector<4x33xf32>
    %9 = vector.extract_strided_slice %6 {offsets = [0, 2], sizes = [4, 33], strides = [1, 1]} : vector<4x40xf32> to vector<4x33xf32>
    %10 = vector.extract_strided_slice %6 {offsets = [0, 3], sizes = [4, 33], strides = [1, 1]} : vector<4x40xf32> to vector<4x33xf32>
    %11 = vector.extract_strided_slice %6 {offsets = [0, 4], sizes = [4, 33], strides = [1, 1]} : vector<4x40xf32> to vector<4x33xf32>
    %12 = vector.extract_strided_slice %6 {offsets = [0, 5], sizes = [4, 33], strides = [1, 1]} : vector<4x40xf32> to vector<4x33xf32>
    %13 = vector.extract_strided_slice %6 {offsets = [0, 6], sizes = [4, 33], strides = [1, 1]} : vector<4x40xf32> to vector<4x33xf32>
    %14 = vector.extract_strided_slice %6 {offsets = [0, 7], sizes = [4, 33], strides = [1, 1]} : vector<4x40xf32> to vector<4x33xf32>
    %15 = tpu.concatenate %7, %8, %9, %10, %11, %12, %13, %14 in 0 : vector<4x33xf32>, vector<4x33xf32>, vector<4x33xf32>, vector<4x33xf32>, vector<4x33xf32>, vector<4x33xf32>, vector<4x33xf32>, vector<4x33xf32> -> vector<32x33xf32>
    %16 = tpu.concatenate %5, %3, %5 in 1 : vector<4x4xf32>, vector<4x32xf32>, vector<4x4xf32> -> vector<4x40xf32>
    %17 = vector.extract_strided_slice %16 {offsets = [0, 0], sizes = [4, 33], strides = [1, 1]} : vector<4x40xf32> to vector<4x33xf32>
    %18 = vector.extract_strided_slice %16 {offsets = [0, 1], sizes = [4, 33], strides = [1, 1]} : vector<4x40xf32> to vector<4x33xf32>
    %19 = vector.extract_strided_slice %16 {offsets = [0, 2], sizes = [4, 33], strides = [1, 1]} : vector<4x40xf32> to vector<4x33xf32>
    %20 = vector.extract_strided_slice %16 {offsets = [0, 3], sizes = [4, 33], strides = [1, 1]} : vector<4x40xf32> to vector<4x33xf32>
    %21 = vector.extract_strided_slice %16 {offsets = [0, 4], sizes = [4, 33], strides = [1, 1]} : vector<4x40xf32> to vector<4x33xf32>
    %22 = vector.extract_strided_slice %16 {offsets = [0, 5], sizes = [4, 33], strides = [1, 1]} : vector<4x40xf32> to vector<4x33xf32>
    %23 = vector.extract_strided_slice %16 {offsets = [0, 6], sizes = [4, 33], strides = [1, 1]} : vector<4x40xf32> to vector<4x33xf32>
    %24 = vector.extract_strided_slice %16 {offsets = [0, 7], sizes = [4, 33], strides = [1, 1]} : vector<4x40xf32> to vector<4x33xf32>
    %25 = tpu.concatenate %17, %18, %19, %20, %21, %22, %23, %24 in 0 : vector<4x33xf32>, vector<4x33xf32>, vector<4x33xf32>, vector<4x33xf32>, vector<4x33xf32>, vector<4x33xf32>, vector<4x33xf32>, vector<4x33xf32> -> vector<32x33xf32>
    %26 = tpu.concatenate %15, %25 in 1 : vector<32x33xf32>, vector<32x33xf32> -> vector<32x66xf32>
    %cst_6 = arith.constant dense<0.000000e+00> : vector<8x66xf32>
    %27 = tpu.matmul %4, %26, %cst_6 {dimension_numbers = #tpu.dot_dimension_numbers<[1], [0], [0], [1], [0, 0, 1, 1], [], []>} : vector<8x32xf32>, vector<32x66xf32>, vector<8x66xf32> -> vector<8x66xf32>
    %c0_7 = arith.constant 0 : index
    %c0_8 = arith.constant 0 : index
    %28 = vector.load %arg2[%c0_7, %c0_8] : memref<8x1xf32, #tpu.memory_space<vmem>>, vector<8x1xf32>
    %29 = vector.broadcast %28 : vector<8x1xf32> to vector<8x66xf32>
    %30 = arith.mulf %27, %29 : vector<8x66xf32>
    %c0_9 = arith.constant 0 : index
    %c0_10 = arith.constant 0 : index
    %31 = vector.load %arg3[%c0_9, %c0_10] : memref<8x1xf32, #tpu.memory_space<vmem>>, vector<8x1xf32>
    %32 = vector.broadcast %31 : vector<8x1xf32> to vector<8x66xf32>
    %33 = arith.addf %30, %32 : vector<8x66xf32>
    %cst_11 = arith.constant 0.000000e+00 : f32
    %34 = vector.broadcast %cst_11 : f32 to vector<8x66xf32>
    %35 = arith.maximumf %33, %34 : vector<8x66xf32>
    %36 = vector.extract_strided_slice %35 {offsets = [0, 0], sizes = [8, 33], strides = [1, 1]} : vector<8x66xf32> to vector<8x33xf32>
    %37 = vector.extract_strided_slice %36 {offsets = [0, 0], sizes = [8, 1], strides = [1, 1]} : vector<8x33xf32> to vector<8x1xf32>
    %38 = vector.extract_strided_slice %36 {offsets = [0, 1], sizes = [8, 1], strides = [1, 1]} : vector<8x33xf32> to vector<8x1xf32>
    %39 = vector.extract_strided_slice %36 {offsets = [0, 2], sizes = [8, 1], strides = [1, 1]} : vector<8x33xf32> to vector<8x1xf32>
    %40 = arith.maximumf %38, %39 : vector<8x1xf32>
    %41 = vector.extract_strided_slice %36 {offsets = [0, 3], sizes = [8, 1], strides = [1, 1]} : vector<8x33xf32> to vector<8x1xf32>
    %42 = vector.extract_strided_slice %36 {offsets = [0, 4], sizes = [8, 1], strides = [1, 1]} : vector<8x33xf32> to vector<8x1xf32>
    %43 = arith.maximumf %41, %42 : vector<8x1xf32>
    %44 = vector.extract_strided_slice %36 {offsets = [0, 5], sizes = [8, 1], strides = [1, 1]} : vector<8x33xf32> to vector<8x1xf32>
    %45 = vector.extract_strided_slice %36 {offsets = [0, 6], sizes = [8, 1], strides = [1, 1]} : vector<8x33xf32> to vector<8x1xf32>
    %46 = arith.maximumf %44, %45 : vector<8x1xf32>
    %47 = vector.extract_strided_slice %36 {offsets = [0, 7], sizes = [8, 1], strides = [1, 1]} : vector<8x33xf32> to vector<8x1xf32>
    %48 = vector.extract_strided_slice %36 {offsets = [0, 8], sizes = [8, 1], strides = [1, 1]} : vector<8x33xf32> to vector<8x1xf32>
    %49 = arith.maximumf %47, %48 : vector<8x1xf32>
    %50 = vector.extract_strided_slice %36 {offsets = [0, 9], sizes = [8, 1], strides = [1, 1]} : vector<8x33xf32> to vector<8x1xf32>
    %51 = vector.extract_strided_slice %36 {offsets = [0, 10], sizes = [8, 1], strides = [1, 1]} : vector<8x33xf32> to vector<8x1xf32>
    %52 = arith.maximumf %50, %51 : vector<8x1xf32>
    %53 = vector.extract_strided_slice %36 {offsets = [0, 11], sizes = [8, 1], strides = [1, 1]} : vector<8x33xf32> to vector<8x1xf32>
    %54 = vector.extract_strided_slice %36 {offsets = [0, 12], sizes = [8, 1], strides = [1, 1]} : vector<8x33xf32> to vector<8x1xf32>
    %55 = arith.maximumf %53, %54 : vector<8x1xf32>
    %56 = vector.extract_strided_slice %36 {offsets = [0, 13], sizes = [8, 1], strides = [1, 1]} : vector<8x33xf32> to vector<8x1xf32>
    %57 = vector.extract_strided_slice %36 {offsets = [0, 14], sizes = [8, 1], strides = [1, 1]} : vector<8x33xf32> to vector<8x1xf32>
    %58 = arith.maximumf %56, %57 : vector<8x1xf32>
    %59 = vector.extract_strided_slice %36 {offsets = [0, 15], sizes = [8, 1], strides = [1, 1]} : vector<8x33xf32> to vector<8x1xf32>
    %60 = vector.extract_strided_slice %36 {offsets = [0, 16], sizes = [8, 1], strides = [1, 1]} : vector<8x33xf32> to vector<8x1xf32>
    %61 = arith.maximumf %59, %60 : vector<8x1xf32>
    %62 = vector.extract_strided_slice %36 {offsets = [0, 17], sizes = [8, 1], strides = [1, 1]} : vector<8x33xf32> to vector<8x1xf32>
    %63 = vector.extract_strided_slice %36 {offsets = [0, 18], sizes = [8, 1], strides = [1, 1]} : vector<8x33xf32> to vector<8x1xf32>
    %64 = arith.maximumf %62, %63 : vector<8x1xf32>
    %65 = vector.extract_strided_slice %36 {offsets = [0, 19], sizes = [8, 1], strides = [1, 1]} : vector<8x33xf32> to vector<8x1xf32>
    %66 = vector.extract_strided_slice %36 {offsets = [0, 20], sizes = [8, 1], strides = [1, 1]} : vector<8x33xf32> to vector<8x1xf32>
    %67 = arith.maximumf %65, %66 : vector<8x1xf32>
    %68 = vector.extract_strided_slice %36 {offsets = [0, 21], sizes = [8, 1], strides = [1, 1]} : vector<8x33xf32> to vector<8x1xf32>
    %69 = vector.extract_strided_slice %36 {offsets = [0, 22], sizes = [8, 1], strides = [1, 1]} : vector<8x33xf32> to vector<8x1xf32>
    %70 = arith.maximumf %68, %69 : vector<8x1xf32>
    %71 = vector.extract_strided_slice %36 {offsets = [0, 23], sizes = [8, 1], strides = [1, 1]} : vector<8x33xf32> to vector<8x1xf32>
    %72 = vector.extract_strided_slice %36 {offsets = [0, 24], sizes = [8, 1], strides = [1, 1]} : vector<8x33xf32> to vector<8x1xf32>
    %73 = arith.maximumf %71, %72 : vector<8x1xf32>
    %74 = vector.extract_strided_slice %36 {offsets = [0, 25], sizes = [8, 1], strides = [1, 1]} : vector<8x33xf32> to vector<8x1xf32>
    %75 = vector.extract_strided_slice %36 {offsets = [0, 26], sizes = [8, 1], strides = [1, 1]} : vector<8x33xf32> to vector<8x1xf32>
    %76 = arith.maximumf %74, %75 : vector<8x1xf32>
    %77 = vector.extract_strided_slice %36 {offsets = [0, 27], sizes = [8, 1], strides = [1, 1]} : vector<8x33xf32> to vector<8x1xf32>
    %78 = vector.extract_strided_slice %36 {offsets = [0, 28], sizes = [8, 1], strides = [1, 1]} : vector<8x33xf32> to vector<8x1xf32>
    %79 = arith.maximumf %77, %78 : vector<8x1xf32>
    %80 = vector.extract_strided_slice %36 {offsets = [0, 29], sizes = [8, 1], strides = [1, 1]} : vector<8x33xf32> to vector<8x1xf32>
    %81 = vector.extract_strided_slice %36 {offsets = [0, 30], sizes = [8, 1], strides = [1, 1]} : vector<8x33xf32> to vector<8x1xf32>
    %82 = arith.maximumf %80, %81 : vector<8x1xf32>
    %83 = vector.extract_strided_slice %36 {offsets = [0, 31], sizes = [8, 1], strides = [1, 1]} : vector<8x33xf32> to vector<8x1xf32>
    %84 = vector.extract_strided_slice %36 {offsets = [0, 32], sizes = [8, 1], strides = [1, 1]} : vector<8x33xf32> to vector<8x1xf32>
    %85 = arith.maximumf %83, %84 : vector<8x1xf32>
    %86 = tpu.concatenate %37, %40, %43, %46, %49, %52, %55, %58, %61, %64, %67, %70, %73, %76, %79, %82 in 1 : vector<8x1xf32>, vector<8x1xf32>, vector<8x1xf32>, vector<8x1xf32>, vector<8x1xf32>, vector<8x1xf32>, vector<8x1xf32>, vector<8x1xf32>, vector<8x1xf32>, vector<8x1xf32>, vector<8x1xf32>, vector<8x1xf32>, vector<8x1xf32>, vector<8x1xf32>, vector<8x1xf32>, vector<8x1xf32> -> vector<8x16xf32>
    %87 = tpu.concatenate %86, %85 in 1 : vector<8x16xf32>, vector<8x1xf32> -> vector<8x17xf32>
    %88 = vector.extract_strided_slice %35 {offsets = [0, 33], sizes = [8, 33], strides = [1, 1]} : vector<8x66xf32> to vector<8x33xf32>
    %89 = vector.extract_strided_slice %88 {offsets = [0, 0], sizes = [8, 1], strides = [1, 1]} : vector<8x33xf32> to vector<8x1xf32>
    %90 = vector.extract_strided_slice %88 {offsets = [0, 1], sizes = [8, 1], strides = [1, 1]} : vector<8x33xf32> to vector<8x1xf32>
    %91 = vector.extract_strided_slice %88 {offsets = [0, 2], sizes = [8, 1], strides = [1, 1]} : vector<8x33xf32> to vector<8x1xf32>
    %92 = arith.maximumf %90, %91 : vector<8x1xf32>
    %93 = vector.extract_strided_slice %88 {offsets = [0, 3], sizes = [8, 1], strides = [1, 1]} : vector<8x33xf32> to vector<8x1xf32>
    %94 = vector.extract_strided_slice %88 {offsets = [0, 4], sizes = [8, 1], strides = [1, 1]} : vector<8x33xf32> to vector<8x1xf32>
    %95 = arith.maximumf %93, %94 : vector<8x1xf32>
    %96 = vector.extract_strided_slice %88 {offsets = [0, 5], sizes = [8, 1], strides = [1, 1]} : vector<8x33xf32> to vector<8x1xf32>
    %97 = vector.extract_strided_slice %88 {offsets = [0, 6], sizes = [8, 1], strides = [1, 1]} : vector<8x33xf32> to vector<8x1xf32>
    %98 = arith.maximumf %96, %97 : vector<8x1xf32>
    %99 = vector.extract_strided_slice %88 {offsets = [0, 7], sizes = [8, 1], strides = [1, 1]} : vector<8x33xf32> to vector<8x1xf32>
    %100 = vector.extract_strided_slice %88 {offsets = [0, 8], sizes = [8, 1], strides = [1, 1]} : vector<8x33xf32> to vector<8x1xf32>
    %101 = arith.maximumf %99, %100 : vector<8x1xf32>
    %102 = vector.extract_strided_slice %88 {offsets = [0, 9], sizes = [8, 1], strides = [1, 1]} : vector<8x33xf32> to vector<8x1xf32>
    %103 = vector.extract_strided_slice %88 {offsets = [0, 10], sizes = [8, 1], strides = [1, 1]} : vector<8x33xf32> to vector<8x1xf32>
    %104 = arith.maximumf %102, %103 : vector<8x1xf32>
    %105 = vector.extract_strided_slice %88 {offsets = [0, 11], sizes = [8, 1], strides = [1, 1]} : vector<8x33xf32> to vector<8x1xf32>
    %106 = vector.extract_strided_slice %88 {offsets = [0, 12], sizes = [8, 1], strides = [1, 1]} : vector<8x33xf32> to vector<8x1xf32>
    %107 = arith.maximumf %105, %106 : vector<8x1xf32>
    %108 = vector.extract_strided_slice %88 {offsets = [0, 13], sizes = [8, 1], strides = [1, 1]} : vector<8x33xf32> to vector<8x1xf32>
    %109 = vector.extract_strided_slice %88 {offsets = [0, 14], sizes = [8, 1], strides = [1, 1]} : vector<8x33xf32> to vector<8x1xf32>
    %110 = arith.maximumf %108, %109 : vector<8x1xf32>
    %111 = vector.extract_strided_slice %88 {offsets = [0, 15], sizes = [8, 1], strides = [1, 1]} : vector<8x33xf32> to vector<8x1xf32>
    %112 = vector.extract_strided_slice %88 {offsets = [0, 16], sizes = [8, 1], strides = [1, 1]} : vector<8x33xf32> to vector<8x1xf32>
    %113 = arith.maximumf %111, %112 : vector<8x1xf32>
    %114 = vector.extract_strided_slice %88 {offsets = [0, 17], sizes = [8, 1], strides = [1, 1]} : vector<8x33xf32> to vector<8x1xf32>
    %115 = vector.extract_strided_slice %88 {offsets = [0, 18], sizes = [8, 1], strides = [1, 1]} : vector<8x33xf32> to vector<8x1xf32>
    %116 = arith.maximumf %114, %115 : vector<8x1xf32>
    %117 = vector.extract_strided_slice %88 {offsets = [0, 19], sizes = [8, 1], strides = [1, 1]} : vector<8x33xf32> to vector<8x1xf32>
    %118 = vector.extract_strided_slice %88 {offsets = [0, 20], sizes = [8, 1], strides = [1, 1]} : vector<8x33xf32> to vector<8x1xf32>
    %119 = arith.maximumf %117, %118 : vector<8x1xf32>
    %120 = vector.extract_strided_slice %88 {offsets = [0, 21], sizes = [8, 1], strides = [1, 1]} : vector<8x33xf32> to vector<8x1xf32>
    %121 = vector.extract_strided_slice %88 {offsets = [0, 22], sizes = [8, 1], strides = [1, 1]} : vector<8x33xf32> to vector<8x1xf32>
    %122 = arith.maximumf %120, %121 : vector<8x1xf32>
    %123 = vector.extract_strided_slice %88 {offsets = [0, 23], sizes = [8, 1], strides = [1, 1]} : vector<8x33xf32> to vector<8x1xf32>
    %124 = vector.extract_strided_slice %88 {offsets = [0, 24], sizes = [8, 1], strides = [1, 1]} : vector<8x33xf32> to vector<8x1xf32>
    %125 = arith.maximumf %123, %124 : vector<8x1xf32>
    %126 = vector.extract_strided_slice %88 {offsets = [0, 25], sizes = [8, 1], strides = [1, 1]} : vector<8x33xf32> to vector<8x1xf32>
    %127 = vector.extract_strided_slice %88 {offsets = [0, 26], sizes = [8, 1], strides = [1, 1]} : vector<8x33xf32> to vector<8x1xf32>
    %128 = arith.maximumf %126, %127 : vector<8x1xf32>
    %129 = vector.extract_strided_slice %88 {offsets = [0, 27], sizes = [8, 1], strides = [1, 1]} : vector<8x33xf32> to vector<8x1xf32>
    %130 = vector.extract_strided_slice %88 {offsets = [0, 28], sizes = [8, 1], strides = [1, 1]} : vector<8x33xf32> to vector<8x1xf32>
    %131 = arith.maximumf %129, %130 : vector<8x1xf32>
    %132 = vector.extract_strided_slice %88 {offsets = [0, 29], sizes = [8, 1], strides = [1, 1]} : vector<8x33xf32> to vector<8x1xf32>
    %133 = vector.extract_strided_slice %88 {offsets = [0, 30], sizes = [8, 1], strides = [1, 1]} : vector<8x33xf32> to vector<8x1xf32>
    %134 = arith.maximumf %132, %133 : vector<8x1xf32>
    %135 = vector.extract_strided_slice %88 {offsets = [0, 31], sizes = [8, 1], strides = [1, 1]} : vector<8x33xf32> to vector<8x1xf32>
    %136 = vector.extract_strided_slice %88 {offsets = [0, 32], sizes = [8, 1], strides = [1, 1]} : vector<8x33xf32> to vector<8x1xf32>
    %137 = arith.maximumf %135, %136 : vector<8x1xf32>
    %138 = tpu.concatenate %89, %92, %95, %98, %101, %104, %107, %110, %113, %116, %119, %122, %125, %128, %131, %134 in 1 : vector<8x1xf32>, vector<8x1xf32>, vector<8x1xf32>, vector<8x1xf32>, vector<8x1xf32>, vector<8x1xf32>, vector<8x1xf32>, vector<8x1xf32>, vector<8x1xf32>, vector<8x1xf32>, vector<8x1xf32>, vector<8x1xf32>, vector<8x1xf32>, vector<8x1xf32>, vector<8x1xf32>, vector<8x1xf32> -> vector<8x16xf32>
    %139 = tpu.concatenate %138, %137 in 1 : vector<8x16xf32>, vector<8x1xf32> -> vector<8x17xf32>
    %c0_12 = arith.constant 0 : index
    %c0_13 = arith.constant 0 : index
    %140 = vector.load %arg4[%c0_12, %c0_13] : memref<16x64xf32, #tpu.memory_space<vmem>>, vector<16x64xf32>
    %cst_14 = arith.constant 0.000000e+00 : f32
    %141 = vector.broadcast %cst_14 : f32 to vector<8x4xf32>
    %142 = tpu.concatenate %141, %87, %141 in 1 : vector<8x4xf32>, vector<8x17xf32>, vector<8x4xf32> -> vector<8x25xf32>
    %143 = vector.extract_strided_slice %142 {offsets = [0, 0], sizes = [8, 18], strides = [1, 1]} : vector<8x25xf32> to vector<8x18xf32>
    %144 = vector.extract_strided_slice %142 {offsets = [0, 1], sizes = [8, 18], strides = [1, 1]} : vector<8x25xf32> to vector<8x18xf32>
    %145 = vector.extract_strided_slice %142 {offsets = [0, 2], sizes = [8, 18], strides = [1, 1]} : vector<8x25xf32> to vector<8x18xf32>
    %146 = vector.extract_strided_slice %142 {offsets = [0, 3], sizes = [8, 18], strides = [1, 1]} : vector<8x25xf32> to vector<8x18xf32>
    %147 = vector.extract_strided_slice %142 {offsets = [0, 4], sizes = [8, 18], strides = [1, 1]} : vector<8x25xf32> to vector<8x18xf32>
    %148 = vector.extract_strided_slice %142 {offsets = [0, 5], sizes = [8, 18], strides = [1, 1]} : vector<8x25xf32> to vector<8x18xf32>
    %149 = vector.extract_strided_slice %142 {offsets = [0, 6], sizes = [8, 18], strides = [1, 1]} : vector<8x25xf32> to vector<8x18xf32>
    %150 = vector.extract_strided_slice %142 {offsets = [0, 7], sizes = [8, 18], strides = [1, 1]} : vector<8x25xf32> to vector<8x18xf32>
    %151 = tpu.concatenate %143, %144, %145, %146, %147, %148, %149, %150 in 0 : vector<8x18xf32>, vector<8x18xf32>, vector<8x18xf32>, vector<8x18xf32>, vector<8x18xf32>, vector<8x18xf32>, vector<8x18xf32>, vector<8x18xf32> -> vector<64x18xf32>
    %152 = tpu.concatenate %141, %139, %141 in 1 : vector<8x4xf32>, vector<8x17xf32>, vector<8x4xf32> -> vector<8x25xf32>
    %153 = vector.extract_strided_slice %152 {offsets = [0, 0], sizes = [8, 18], strides = [1, 1]} : vector<8x25xf32> to vector<8x18xf32>
    %154 = vector.extract_strided_slice %152 {offsets = [0, 1], sizes = [8, 18], strides = [1, 1]} : vector<8x25xf32> to vector<8x18xf32>
    %155 = vector.extract_strided_slice %152 {offsets = [0, 2], sizes = [8, 18], strides = [1, 1]} : vector<8x25xf32> to vector<8x18xf32>
    %156 = vector.extract_strided_slice %152 {offsets = [0, 3], sizes = [8, 18], strides = [1, 1]} : vector<8x25xf32> to vector<8x18xf32>
    %157 = vector.extract_strided_slice %152 {offsets = [0, 4], sizes = [8, 18], strides = [1, 1]} : vector<8x25xf32> to vector<8x18xf32>
    %158 = vector.extract_strided_slice %152 {offsets = [0, 5], sizes = [8, 18], strides = [1, 1]} : vector<8x25xf32> to vector<8x18xf32>
    %159 = vector.extract_strided_slice %152 {offsets = [0, 6], sizes = [8, 18], strides = [1, 1]} : vector<8x25xf32> to vector<8x18xf32>
    %160 = vector.extract_strided_slice %152 {offsets = [0, 7], sizes = [8, 18], strides = [1, 1]} : vector<8x25xf32> to vector<8x18xf32>
    %161 = tpu.concatenate %153, %154, %155, %156, %157, %158, %159, %160 in 0 : vector<8x18xf32>, vector<8x18xf32>, vector<8x18xf32>, vector<8x18xf32>, vector<8x18xf32>, vector<8x18xf32>, vector<8x18xf32>, vector<8x18xf32> -> vector<64x18xf32>
    %162 = tpu.concatenate %151, %161 in 1 : vector<64x18xf32>, vector<64x18xf32> -> vector<64x36xf32>
    %cst_15 = arith.constant dense<0.000000e+00> : vector<16x36xf32>
    %163 = tpu.matmul %140, %162, %cst_15 {dimension_numbers = #tpu.dot_dimension_numbers<[1], [0], [0], [1], [0, 0, 1, 1], [], []>} : vector<16x64xf32>, vector<64x36xf32>, vector<16x36xf32> -> vector<16x36xf32>
    %c0_16 = arith.constant 0 : index
    %c0_17 = arith.constant 0 : index
    %164 = vector.load %arg5[%c0_16, %c0_17] : memref<16x1xf32, #tpu.memory_space<vmem>>, vector<16x1xf32>
    %165 = vector.broadcast %164 : vector<16x1xf32> to vector<16x36xf32>
    %166 = arith.mulf %163, %165 : vector<16x36xf32>
    %c0_18 = arith.constant 0 : index
    %c0_19 = arith.constant 0 : index
    %167 = vector.load %arg6[%c0_18, %c0_19] : memref<16x1xf32, #tpu.memory_space<vmem>>, vector<16x1xf32>
    %168 = vector.broadcast %167 : vector<16x1xf32> to vector<16x36xf32>
    %169 = arith.addf %166, %168 : vector<16x36xf32>
    %cst_20 = arith.constant 0.000000e+00 : f32
    %170 = vector.broadcast %cst_20 : f32 to vector<16x36xf32>
    %171 = arith.maximumf %169, %170 : vector<16x36xf32>
    %172 = vector.extract_strided_slice %171 {offsets = [0, 0], sizes = [16, 18], strides = [1, 1]} : vector<16x36xf32> to vector<16x18xf32>
    %173 = vector.extract_strided_slice %172 {offsets = [0, 0], sizes = [16, 1], strides = [1, 1]} : vector<16x18xf32> to vector<16x1xf32>
    %174 = vector.extract_strided_slice %172 {offsets = [0, 1], sizes = [16, 1], strides = [1, 1]} : vector<16x18xf32> to vector<16x1xf32>
    %175 = vector.extract_strided_slice %172 {offsets = [0, 2], sizes = [16, 1], strides = [1, 1]} : vector<16x18xf32> to vector<16x1xf32>
    %176 = arith.maximumf %174, %175 : vector<16x1xf32>
    %177 = vector.extract_strided_slice %172 {offsets = [0, 3], sizes = [16, 1], strides = [1, 1]} : vector<16x18xf32> to vector<16x1xf32>
    %178 = vector.extract_strided_slice %172 {offsets = [0, 4], sizes = [16, 1], strides = [1, 1]} : vector<16x18xf32> to vector<16x1xf32>
    %179 = arith.maximumf %177, %178 : vector<16x1xf32>
    %180 = vector.extract_strided_slice %172 {offsets = [0, 5], sizes = [16, 1], strides = [1, 1]} : vector<16x18xf32> to vector<16x1xf32>
    %181 = vector.extract_strided_slice %172 {offsets = [0, 6], sizes = [16, 1], strides = [1, 1]} : vector<16x18xf32> to vector<16x1xf32>
    %182 = arith.maximumf %180, %181 : vector<16x1xf32>
    %183 = vector.extract_strided_slice %172 {offsets = [0, 7], sizes = [16, 1], strides = [1, 1]} : vector<16x18xf32> to vector<16x1xf32>
    %184 = vector.extract_strided_slice %172 {offsets = [0, 8], sizes = [16, 1], strides = [1, 1]} : vector<16x18xf32> to vector<16x1xf32>
    %185 = arith.maximumf %183, %184 : vector<16x1xf32>
    %186 = vector.extract_strided_slice %172 {offsets = [0, 9], sizes = [16, 1], strides = [1, 1]} : vector<16x18xf32> to vector<16x1xf32>
    %187 = vector.extract_strided_slice %172 {offsets = [0, 10], sizes = [16, 1], strides = [1, 1]} : vector<16x18xf32> to vector<16x1xf32>
    %188 = arith.maximumf %186, %187 : vector<16x1xf32>
    %189 = vector.extract_strided_slice %172 {offsets = [0, 11], sizes = [16, 1], strides = [1, 1]} : vector<16x18xf32> to vector<16x1xf32>
    %190 = vector.extract_strided_slice %172 {offsets = [0, 12], sizes = [16, 1], strides = [1, 1]} : vector<16x18xf32> to vector<16x1xf32>
    %191 = arith.maximumf %189, %190 : vector<16x1xf32>
    %192 = vector.extract_strided_slice %172 {offsets = [0, 13], sizes = [16, 1], strides = [1, 1]} : vector<16x18xf32> to vector<16x1xf32>
    %193 = vector.extract_strided_slice %172 {offsets = [0, 14], sizes = [16, 1], strides = [1, 1]} : vector<16x18xf32> to vector<16x1xf32>
    %194 = arith.maximumf %192, %193 : vector<16x1xf32>
    %195 = vector.extract_strided_slice %172 {offsets = [0, 15], sizes = [16, 1], strides = [1, 1]} : vector<16x18xf32> to vector<16x1xf32>
    %196 = vector.extract_strided_slice %172 {offsets = [0, 16], sizes = [16, 1], strides = [1, 1]} : vector<16x18xf32> to vector<16x1xf32>
    %197 = arith.maximumf %195, %196 : vector<16x1xf32>
    %198 = vector.extract_strided_slice %172 {offsets = [0, 17], sizes = [16, 1], strides = [1, 1]} : vector<16x18xf32> to vector<16x1xf32>
    %199 = tpu.concatenate %173, %176, %179, %182, %185, %188, %191, %194, %197, %198 in 1 : vector<16x1xf32>, vector<16x1xf32>, vector<16x1xf32>, vector<16x1xf32>, vector<16x1xf32>, vector<16x1xf32>, vector<16x1xf32>, vector<16x1xf32>, vector<16x1xf32>, vector<16x1xf32> -> vector<16x10xf32>
    %200 = vector.extract_strided_slice %171 {offsets = [0, 18], sizes = [16, 18], strides = [1, 1]} : vector<16x36xf32> to vector<16x18xf32>
    %201 = vector.extract_strided_slice %200 {offsets = [0, 0], sizes = [16, 1], strides = [1, 1]} : vector<16x18xf32> to vector<16x1xf32>
    %202 = vector.extract_strided_slice %200 {offsets = [0, 1], sizes = [16, 1], strides = [1, 1]} : vector<16x18xf32> to vector<16x1xf32>
    %203 = vector.extract_strided_slice %200 {offsets = [0, 2], sizes = [16, 1], strides = [1, 1]} : vector<16x18xf32> to vector<16x1xf32>
    %204 = arith.maximumf %202, %203 : vector<16x1xf32>
    %205 = vector.extract_strided_slice %200 {offsets = [0, 3], sizes = [16, 1], strides = [1, 1]} : vector<16x18xf32> to vector<16x1xf32>
    %206 = vector.extract_strided_slice %200 {offsets = [0, 4], sizes = [16, 1], strides = [1, 1]} : vector<16x18xf32> to vector<16x1xf32>
    %207 = arith.maximumf %205, %206 : vector<16x1xf32>
    %208 = vector.extract_strided_slice %200 {offsets = [0, 5], sizes = [16, 1], strides = [1, 1]} : vector<16x18xf32> to vector<16x1xf32>
    %209 = vector.extract_strided_slice %200 {offsets = [0, 6], sizes = [16, 1], strides = [1, 1]} : vector<16x18xf32> to vector<16x1xf32>
    %210 = arith.maximumf %208, %209 : vector<16x1xf32>
    %211 = vector.extract_strided_slice %200 {offsets = [0, 7], sizes = [16, 1], strides = [1, 1]} : vector<16x18xf32> to vector<16x1xf32>
    %212 = vector.extract_strided_slice %200 {offsets = [0, 8], sizes = [16, 1], strides = [1, 1]} : vector<16x18xf32> to vector<16x1xf32>
    %213 = arith.maximumf %211, %212 : vector<16x1xf32>
    %214 = vector.extract_strided_slice %200 {offsets = [0, 9], sizes = [16, 1], strides = [1, 1]} : vector<16x18xf32> to vector<16x1xf32>
    %215 = vector.extract_strided_slice %200 {offsets = [0, 10], sizes = [16, 1], strides = [1, 1]} : vector<16x18xf32> to vector<16x1xf32>
    %216 = arith.maximumf %214, %215 : vector<16x1xf32>
    %217 = vector.extract_strided_slice %200 {offsets = [0, 11], sizes = [16, 1], strides = [1, 1]} : vector<16x18xf32> to vector<16x1xf32>
    %218 = vector.extract_strided_slice %200 {offsets = [0, 12], sizes = [16, 1], strides = [1, 1]} : vector<16x18xf32> to vector<16x1xf32>
    %219 = arith.maximumf %217, %218 : vector<16x1xf32>
    %220 = vector.extract_strided_slice %200 {offsets = [0, 13], sizes = [16, 1], strides = [1, 1]} : vector<16x18xf32> to vector<16x1xf32>
    %221 = vector.extract_strided_slice %200 {offsets = [0, 14], sizes = [16, 1], strides = [1, 1]} : vector<16x18xf32> to vector<16x1xf32>
    %222 = arith.maximumf %220, %221 : vector<16x1xf32>
    %223 = vector.extract_strided_slice %200 {offsets = [0, 15], sizes = [16, 1], strides = [1, 1]} : vector<16x18xf32> to vector<16x1xf32>
    %224 = vector.extract_strided_slice %200 {offsets = [0, 16], sizes = [16, 1], strides = [1, 1]} : vector<16x18xf32> to vector<16x1xf32>
    %225 = arith.maximumf %223, %224 : vector<16x1xf32>
    %226 = vector.extract_strided_slice %200 {offsets = [0, 17], sizes = [16, 1], strides = [1, 1]} : vector<16x18xf32> to vector<16x1xf32>
    %227 = tpu.concatenate %201, %204, %207, %210, %213, %216, %219, %222, %225, %226 in 1 : vector<16x1xf32>, vector<16x1xf32>, vector<16x1xf32>, vector<16x1xf32>, vector<16x1xf32>, vector<16x1xf32>, vector<16x1xf32>, vector<16x1xf32>, vector<16x1xf32>, vector<16x1xf32> -> vector<16x10xf32>
    %c0_21 = arith.constant 0 : index
    %c0_22 = arith.constant 0 : index
    %228 = vector.load %arg7[%c0_21, %c0_22] : memref<16x128xf32, #tpu.memory_space<vmem>>, vector<16x128xf32>
    %cst_23 = arith.constant 0.000000e+00 : f32
    %229 = vector.broadcast %cst_23 : f32 to vector<16x4xf32>
    %230 = tpu.concatenate %229, %199, %229 in 1 : vector<16x4xf32>, vector<16x10xf32>, vector<16x4xf32> -> vector<16x18xf32>
    %231 = vector.extract_strided_slice %230 {offsets = [0, 0], sizes = [16, 11], strides = [1, 1]} : vector<16x18xf32> to vector<16x11xf32>
    %232 = vector.extract_strided_slice %230 {offsets = [0, 1], sizes = [16, 11], strides = [1, 1]} : vector<16x18xf32> to vector<16x11xf32>
    %233 = vector.extract_strided_slice %230 {offsets = [0, 2], sizes = [16, 11], strides = [1, 1]} : vector<16x18xf32> to vector<16x11xf32>
    %234 = vector.extract_strided_slice %230 {offsets = [0, 3], sizes = [16, 11], strides = [1, 1]} : vector<16x18xf32> to vector<16x11xf32>
    %235 = vector.extract_strided_slice %230 {offsets = [0, 4], sizes = [16, 11], strides = [1, 1]} : vector<16x18xf32> to vector<16x11xf32>
    %236 = vector.extract_strided_slice %230 {offsets = [0, 5], sizes = [16, 11], strides = [1, 1]} : vector<16x18xf32> to vector<16x11xf32>
    %237 = vector.extract_strided_slice %230 {offsets = [0, 6], sizes = [16, 11], strides = [1, 1]} : vector<16x18xf32> to vector<16x11xf32>
    %238 = vector.extract_strided_slice %230 {offsets = [0, 7], sizes = [16, 11], strides = [1, 1]} : vector<16x18xf32> to vector<16x11xf32>
    %239 = tpu.concatenate %231, %232, %233, %234, %235, %236, %237, %238 in 0 : vector<16x11xf32>, vector<16x11xf32>, vector<16x11xf32>, vector<16x11xf32>, vector<16x11xf32>, vector<16x11xf32>, vector<16x11xf32>, vector<16x11xf32> -> vector<128x11xf32>
    %240 = tpu.concatenate %229, %227, %229 in 1 : vector<16x4xf32>, vector<16x10xf32>, vector<16x4xf32> -> vector<16x18xf32>
    %241 = vector.extract_strided_slice %240 {offsets = [0, 0], sizes = [16, 11], strides = [1, 1]} : vector<16x18xf32> to vector<16x11xf32>
    %242 = vector.extract_strided_slice %240 {offsets = [0, 1], sizes = [16, 11], strides = [1, 1]} : vector<16x18xf32> to vector<16x11xf32>
    %243 = vector.extract_strided_slice %240 {offsets = [0, 2], sizes = [16, 11], strides = [1, 1]} : vector<16x18xf32> to vector<16x11xf32>
    %244 = vector.extract_strided_slice %240 {offsets = [0, 3], sizes = [16, 11], strides = [1, 1]} : vector<16x18xf32> to vector<16x11xf32>
    %245 = vector.extract_strided_slice %240 {offsets = [0, 4], sizes = [16, 11], strides = [1, 1]} : vector<16x18xf32> to vector<16x11xf32>
    %246 = vector.extract_strided_slice %240 {offsets = [0, 5], sizes = [16, 11], strides = [1, 1]} : vector<16x18xf32> to vector<16x11xf32>
    %247 = vector.extract_strided_slice %240 {offsets = [0, 6], sizes = [16, 11], strides = [1, 1]} : vector<16x18xf32> to vector<16x11xf32>
    %248 = vector.extract_strided_slice %240 {offsets = [0, 7], sizes = [16, 11], strides = [1, 1]} : vector<16x18xf32> to vector<16x11xf32>
    %249 = tpu.concatenate %241, %242, %243, %244, %245, %246, %247, %248 in 0 : vector<16x11xf32>, vector<16x11xf32>, vector<16x11xf32>, vector<16x11xf32>, vector<16x11xf32>, vector<16x11xf32>, vector<16x11xf32>, vector<16x11xf32> -> vector<128x11xf32>
    %250 = tpu.concatenate %239, %249 in 1 : vector<128x11xf32>, vector<128x11xf32> -> vector<128x22xf32>
    %cst_24 = arith.constant dense<0.000000e+00> : vector<16x22xf32>
    %251 = tpu.matmul %228, %250, %cst_24 {dimension_numbers = #tpu.dot_dimension_numbers<[1], [0], [0], [1], [0, 0, 1, 1], [], []>} : vector<16x128xf32>, vector<128x22xf32>, vector<16x22xf32> -> vector<16x22xf32>
    %c0_25 = arith.constant 0 : index
    %c0_26 = arith.constant 0 : index
    %252 = vector.load %arg8[%c0_25, %c0_26] : memref<16x1xf32, #tpu.memory_space<vmem>>, vector<16x1xf32>
    %253 = vector.broadcast %252 : vector<16x1xf32> to vector<16x22xf32>
    %254 = arith.mulf %251, %253 : vector<16x22xf32>
    %c0_27 = arith.constant 0 : index
    %c0_28 = arith.constant 0 : index
    %255 = vector.load %arg9[%c0_27, %c0_28] : memref<16x1xf32, #tpu.memory_space<vmem>>, vector<16x1xf32>
    %256 = vector.broadcast %255 : vector<16x1xf32> to vector<16x22xf32>
    %257 = arith.addf %254, %256 : vector<16x22xf32>
    %cst_29 = arith.constant 0.000000e+00 : f32
    %258 = vector.broadcast %cst_29 : f32 to vector<16x22xf32>
    %259 = arith.maximumf %257, %258 : vector<16x22xf32>
    %260 = vector.extract_strided_slice %259 {offsets = [0, 0], sizes = [16, 11], strides = [1, 1]} : vector<16x22xf32> to vector<16x11xf32>
    %261 = vector.extract_strided_slice %260 {offsets = [0, 0], sizes = [16, 1], strides = [1, 1]} : vector<16x11xf32> to vector<16x1xf32>
    %262 = vector.extract_strided_slice %260 {offsets = [0, 1], sizes = [16, 1], strides = [1, 1]} : vector<16x11xf32> to vector<16x1xf32>
    %263 = vector.extract_strided_slice %260 {offsets = [0, 2], sizes = [16, 1], strides = [1, 1]} : vector<16x11xf32> to vector<16x1xf32>
    %264 = arith.maximumf %262, %263 : vector<16x1xf32>
    %265 = vector.extract_strided_slice %260 {offsets = [0, 3], sizes = [16, 1], strides = [1, 1]} : vector<16x11xf32> to vector<16x1xf32>
    %266 = vector.extract_strided_slice %260 {offsets = [0, 4], sizes = [16, 1], strides = [1, 1]} : vector<16x11xf32> to vector<16x1xf32>
    %267 = arith.maximumf %265, %266 : vector<16x1xf32>
    %268 = vector.extract_strided_slice %260 {offsets = [0, 5], sizes = [16, 1], strides = [1, 1]} : vector<16x11xf32> to vector<16x1xf32>
    %269 = vector.extract_strided_slice %260 {offsets = [0, 6], sizes = [16, 1], strides = [1, 1]} : vector<16x11xf32> to vector<16x1xf32>
    %270 = arith.maximumf %268, %269 : vector<16x1xf32>
    %271 = vector.extract_strided_slice %260 {offsets = [0, 7], sizes = [16, 1], strides = [1, 1]} : vector<16x11xf32> to vector<16x1xf32>
    %272 = vector.extract_strided_slice %260 {offsets = [0, 8], sizes = [16, 1], strides = [1, 1]} : vector<16x11xf32> to vector<16x1xf32>
    %273 = arith.maximumf %271, %272 : vector<16x1xf32>
    %274 = vector.extract_strided_slice %260 {offsets = [0, 9], sizes = [16, 1], strides = [1, 1]} : vector<16x11xf32> to vector<16x1xf32>
    %275 = vector.extract_strided_slice %260 {offsets = [0, 10], sizes = [16, 1], strides = [1, 1]} : vector<16x11xf32> to vector<16x1xf32>
    %276 = arith.maximumf %274, %275 : vector<16x1xf32>
    %277 = tpu.concatenate %261, %264, %267, %270, %273, %276 in 1 : vector<16x1xf32>, vector<16x1xf32>, vector<16x1xf32>, vector<16x1xf32>, vector<16x1xf32>, vector<16x1xf32> -> vector<16x6xf32>
    %278 = vector.extract_strided_slice %259 {offsets = [0, 11], sizes = [16, 11], strides = [1, 1]} : vector<16x22xf32> to vector<16x11xf32>
    %279 = vector.extract_strided_slice %278 {offsets = [0, 0], sizes = [16, 1], strides = [1, 1]} : vector<16x11xf32> to vector<16x1xf32>
    %280 = vector.extract_strided_slice %278 {offsets = [0, 1], sizes = [16, 1], strides = [1, 1]} : vector<16x11xf32> to vector<16x1xf32>
    %281 = vector.extract_strided_slice %278 {offsets = [0, 2], sizes = [16, 1], strides = [1, 1]} : vector<16x11xf32> to vector<16x1xf32>
    %282 = arith.maximumf %280, %281 : vector<16x1xf32>
    %283 = vector.extract_strided_slice %278 {offsets = [0, 3], sizes = [16, 1], strides = [1, 1]} : vector<16x11xf32> to vector<16x1xf32>
    %284 = vector.extract_strided_slice %278 {offsets = [0, 4], sizes = [16, 1], strides = [1, 1]} : vector<16x11xf32> to vector<16x1xf32>
    %285 = arith.maximumf %283, %284 : vector<16x1xf32>
    %286 = vector.extract_strided_slice %278 {offsets = [0, 5], sizes = [16, 1], strides = [1, 1]} : vector<16x11xf32> to vector<16x1xf32>
    %287 = vector.extract_strided_slice %278 {offsets = [0, 6], sizes = [16, 1], strides = [1, 1]} : vector<16x11xf32> to vector<16x1xf32>
    %288 = arith.maximumf %286, %287 : vector<16x1xf32>
    %289 = vector.extract_strided_slice %278 {offsets = [0, 7], sizes = [16, 1], strides = [1, 1]} : vector<16x11xf32> to vector<16x1xf32>
    %290 = vector.extract_strided_slice %278 {offsets = [0, 8], sizes = [16, 1], strides = [1, 1]} : vector<16x11xf32> to vector<16x1xf32>
    %291 = arith.maximumf %289, %290 : vector<16x1xf32>
    %292 = vector.extract_strided_slice %278 {offsets = [0, 9], sizes = [16, 1], strides = [1, 1]} : vector<16x11xf32> to vector<16x1xf32>
    %293 = vector.extract_strided_slice %278 {offsets = [0, 10], sizes = [16, 1], strides = [1, 1]} : vector<16x11xf32> to vector<16x1xf32>
    %294 = arith.maximumf %292, %293 : vector<16x1xf32>
    %295 = tpu.concatenate %279, %282, %285, %288, %291, %294 in 1 : vector<16x1xf32>, vector<16x1xf32>, vector<16x1xf32>, vector<16x1xf32>, vector<16x1xf32>, vector<16x1xf32> -> vector<16x6xf32>
    %c0_30 = arith.constant 0 : index
    %c0_31 = arith.constant 0 : index
    %c0_32 = arith.constant 0 : index
    %296 = vector.load %arg10[%c0_30, %c0_31, %c0_32] : memref<2x16x6xf32, #tpu.memory_space<vmem>>, vector<1x16x6xf32>
    %297 = vector.shape_cast %296 : vector<1x16x6xf32> to vector<16x6xf32>
    %298 = vector.shape_cast %277 : vector<16x6xf32> to vector<1x16x6xf32>
    tpu.vector_store %arg10[%c0_30, %c0_31, %c0_32], %298 {strides = array<i32>} : memref<2x16x6xf32, #tpu.memory_space<vmem>>, vector<1x16x6xf32>,
    %299 = vector.extract_strided_slice %277 {offsets = [0, 0], sizes = [16, 3], strides = [1, 1]} : vector<16x6xf32> to vector<16x3xf32>
    %cst_33 = arith.constant dense<0.000000e+00> : vector<16xf32>
    %300 = vector.multi_reduction <add>, %299, %cst_33 [1] : vector<16x3xf32> to vector<16xf32>
    %301 = vector.shape_cast %300 : vector<16xf32> to vector<16x1xf32>
    %cst_34 = arith.constant 3.000000e+00 : f32
    %302 = vector.broadcast %cst_34 : f32 to vector<16x1xf32>
    %303 = arith.divf %301, %302 : vector<16x1xf32>
    %304 = vector.extract_strided_slice %277 {offsets = [0, 3], sizes = [16, 3], strides = [1, 1]} : vector<16x6xf32> to vector<16x3xf32>
    %cst_35 = arith.constant dense<0.000000e+00> : vector<16xf32>
    %305 = vector.multi_reduction <add>, %304, %cst_35 [1] : vector<16x3xf32> to vector<16xf32>
    %306 = vector.shape_cast %305 : vector<16xf32> to vector<16x1xf32>
    %cst_36 = arith.constant 3.000000e+00 : f32
    %307 = vector.broadcast %cst_36 : f32 to vector<16x1xf32>
    %308 = arith.divf %306, %307 : vector<16x1xf32>
    %309 = tpu.concatenate %303, %308 in 1 : vector<16x1xf32>, vector<16x1xf32> -> vector<16x2xf32>
    %c0_37 = arith.constant 0 : index
    %c0_38 = arith.constant 0 : index
    %c0_39 = arith.constant 0 : index
    %310 = vector.load %arg11[%c0_37, %c0_38, %c0_39] : memref<2x16x2xf32, #tpu.memory_space<vmem>>, vector<1x16x2xf32>
    %311 = vector.shape_cast %310 : vector<1x16x2xf32> to vector<16x2xf32>
    %312 = vector.shape_cast %309 : vector<16x2xf32> to vector<1x16x2xf32>
    tpu.vector_store %arg11[%c0_37, %c0_38, %c0_39], %312 {strides = array<i32>} : memref<2x16x2xf32, #tpu.memory_space<vmem>>, vector<1x16x2xf32>,
    %c1_40 = arith.constant 1 : index
    %c0_41 = arith.constant 0 : index
    %c0_42 = arith.constant 0 : index
    %313 = vector.load %arg10[%c1_40, %c0_41, %c0_42] : memref<2x16x6xf32, #tpu.memory_space<vmem>>, vector<1x16x6xf32>
    %314 = vector.shape_cast %313 : vector<1x16x6xf32> to vector<16x6xf32>
    %315 = vector.shape_cast %295 : vector<16x6xf32> to vector<1x16x6xf32>
    tpu.vector_store %arg10[%c1_40, %c0_41, %c0_42], %315 {strides = array<i32>} : memref<2x16x6xf32, #tpu.memory_space<vmem>>, vector<1x16x6xf32>,
    %316 = vector.extract_strided_slice %295 {offsets = [0, 0], sizes = [16, 3], strides = [1, 1]} : vector<16x6xf32> to vector<16x3xf32>
    %cst_43 = arith.constant dense<0.000000e+00> : vector<16xf32>
    %317 = vector.multi_reduction <add>, %316, %cst_43 [1] : vector<16x3xf32> to vector<16xf32>
    %318 = vector.shape_cast %317 : vector<16xf32> to vector<16x1xf32>
    %cst_44 = arith.constant 3.000000e+00 : f32
    %319 = vector.broadcast %cst_44 : f32 to vector<16x1xf32>
    %320 = arith.divf %318, %319 : vector<16x1xf32>
    %321 = vector.extract_strided_slice %295 {offsets = [0, 3], sizes = [16, 3], strides = [1, 1]} : vector<16x6xf32> to vector<16x3xf32>
    %cst_45 = arith.constant dense<0.000000e+00> : vector<16xf32>
    %322 = vector.multi_reduction <add>, %321, %cst_45 [1] : vector<16x3xf32> to vector<16xf32>
    %323 = vector.shape_cast %322 : vector<16xf32> to vector<16x1xf32>
    %cst_46 = arith.constant 3.000000e+00 : f32
    %324 = vector.broadcast %cst_46 : f32 to vector<16x1xf32>
    %325 = arith.divf %323, %324 : vector<16x1xf32>
    %326 = tpu.concatenate %320, %325 in 1 : vector<16x1xf32>, vector<16x1xf32> -> vector<16x2xf32>
    %c1_47 = arith.constant 1 : index
    %c0_48 = arith.constant 0 : index
    %c0_49 = arith.constant 0 : index
    %327 = vector.load %arg11[%c1_47, %c0_48, %c0_49] : memref<2x16x2xf32, #tpu.memory_space<vmem>>, vector<1x16x2xf32>
    %328 = vector.shape_cast %327 : vector<1x16x2xf32> to vector<16x2xf32>
    %329 = vector.shape_cast %326 : vector<16x2xf32> to vector<1x16x2xf32>
    tpu.vector_store %arg11[%c1_47, %c0_48, %c0_49], %329 {strides = array<i32>} : memref<2x16x2xf32, #tpu.memory_space<vmem>>, vector<1x16x2xf32>,
    return
  }
}

</mosaic_0001>

<llo_original>
// kernel: tpu_custom_call.1
$region0: #{tpu_custom_call.1}
  #allocation0 [shape = 'u32[]', space=smem, size = 0x4, offset = 0x4, fixed_abs, tag = 'smem constant byte address 0x4 - core index']
  #allocation1 [shape = 'u32[144,128]{1,0:T(1,128)}', space=vmem, size = 0x12000, scoped, tag = 'internal scratch']
  %s0 = inlined_call_operand.vmem [shape: f32[2,4,32], index: 0, kind: input, shape index: {}]
  %s1 = inlined_call_operand.vmem [shape: f32[8,32], index: 1, kind: input, shape index: {}]
  %s2 = inlined_call_operand.vmem [shape: f32[8,1], index: 2, kind: input, shape index: {}]
  %s3 = inlined_call_operand.vmem [shape: f32[8,1], index: 3, kind: input, shape index: {}]
  %s4 = inlined_call_operand.vmem [shape: f32[16,64], index: 4, kind: input, shape index: {}]
  %s5 = inlined_call_operand.vmem [shape: f32[16,1], index: 5, kind: input, shape index: {}]
  %s6 = inlined_call_operand.vmem [shape: f32[16,1], index: 6, kind: input, shape index: {}]
  %s7 = inlined_call_operand.vmem [shape: f32[16,128], index: 7, kind: input, shape index: {}]
  %s8 = inlined_call_operand.vmem [shape: f32[16,1], index: 8, kind: input, shape index: {}]
  %s9 = inlined_call_operand.vmem [shape: f32[16,1], index: 9, kind: input, shape index: {}]
  %s10 = inlined_call_operand.vmem [shape: f32[2,16,6], index: 10, kind: output, shape index: {0}]
  %s11 = inlined_call_operand.vmem [shape: f32[2,16,2], index: 11, kind: output, shape index: {1}]
  %12 = xla_tuple %s10, %s11
  %s13 = sld [smem:[#allocation0]]
  $region58: #{tpu_custom_call.1} parent=0
    _
  %s15 = ssub.s32 1, %s13
  %s16 = scalar_select 0, %s15, %s13
  // Predicated region
  $region2: #{tpu_custom_call.1} parent=0 // pred_check
    _
  $region3: #{tpu_custom_call.1} parent=0 // pred_check_branch
    %18 = sbr.rel (0) target = $region5
  $region4: #{tpu_custom_call.1} parent=0 // pred_region
    _
  $region5: #{tpu_custom_call.1} parent=0 // pred_fallthru
    _
  // Predicated region
  $region6: #{tpu_custom_call.1} parent=0 // pred_check
    _
  $region7: #{tpu_custom_call.1} parent=0 // pred_check_branch
    %20 = sbr.rel (0) target = $region9
  $region8: #{tpu_custom_call.1} parent=0 // pred_region
    _
  $region9: #{tpu_custom_call.1} parent=0 // pred_fallthru
    _
  // Predicated region
  $region10: #{tpu_custom_call.1} parent=0 // pred_check
    _
  $region11: #{tpu_custom_call.1} parent=0 // pred_check_branch
    %22 = sbr.rel (0) target = $region13
  $region12: #{tpu_custom_call.1} parent=0 // pred_region
    _
  $region13: #{tpu_custom_call.1} parent=0 // pred_fallthru
    _
  // Predicated region
  $region14: #{tpu_custom_call.1} parent=0 // pred_check
    _
  $region15: #{tpu_custom_call.1} parent=0 // pred_check_branch
    %24 = sbr.rel (0) target = $region17
  $region16: #{tpu_custom_call.1} parent=0 // pred_region
    _
  $region17: #{tpu_custom_call.1} parent=0 // pred_fallthru
    _
  // Predicated region
  $region18: #{tpu_custom_call.1} parent=0 // pred_check
    _
  $region19: #{tpu_custom_call.1} parent=0 // pred_check_branch
    %26 = sbr.rel (0) target = $region21
  $region20: #{tpu_custom_call.1} parent=0 // pred_region
    _
  $region21: #{tpu_custom_call.1} parent=0 // pred_fallthru
    _
  // Predicated region
  $region22: #{tpu_custom_call.1} parent=0 // pred_check
    _
  $region23: #{tpu_custom_call.1} parent=0 // pred_check_branch
    %28 = sbr.rel (0) target = $region25
  $region24: #{tpu_custom_call.1} parent=0 // pred_region
    _
  $region25: #{tpu_custom_call.1} parent=0 // pred_fallthru
    _
  // Predicated region
  $region26: #{tpu_custom_call.1} parent=0 // pred_check
    _
  $region27: #{tpu_custom_call.1} parent=0 // pred_check_branch
    %30 = sbr.rel (0) target = $region29
  $region28: #{tpu_custom_call.1} parent=0 // pred_region
    _
  $region29: #{tpu_custom_call.1} parent=0 // pred_fallthru
    _
  // Predicated region
  $region30: #{tpu_custom_call.1} parent=0 // pred_check
    _
  $region31: #{tpu_custom_call.1} parent=0 // pred_check_branch
    %32 = sbr.rel (0) target = $region33
  $region32: #{tpu_custom_call.1} parent=0 // pred_region
    _
  $region33: #{tpu_custom_call.1} parent=0 // pred_fallthru
    _
  // Predicated region
  $region34: #{tpu_custom_call.1} parent=0 // pred_check
    _
  $region35: #{tpu_custom_call.1} parent=0 // pred_check_branch
    %34 = sbr.rel (0) target = $region37
  $region36: #{tpu_custom_call.1} parent=0 // pred_region
    _
  $region37: #{tpu_custom_call.1} parent=0 // pred_fallthru
    _
  // Predicated region
  $region38: #{tpu_custom_call.1} parent=0 // pred_check
    _
  $region39: #{tpu_custom_call.1} parent=0 // pred_check_branch
    %36 = sbr.rel (0) target = $region41
  $region40: #{tpu_custom_call.1} parent=0 // pred_region
    _
  $region41: #{tpu_custom_call.1} parent=0 // pred_fallthru
    _
  %v37 = vld [vmem:[%s0] sm:$0xf]
  %s38 = scalar_lea.vmem %s0, 4
  %v39 = vld [vmem:[%s38] sm:$0xf]
  %v40 = vld [vmem:[%s1] sm:$0xff]
  %42 = vrot.lane.b32.xlu0 %v37, 4
  %v43 = vpop.permute.xlu0 %42
  %vm45 = vcmask 31744
  %v46 = vsel %vm45, 0.0, %v43
  %vm47 = vcmask 293888
  %v48 = vsel %vm47, %v46, 0.0
  %v50 = vrot.slane %v48, 4
  %51 = vrot.lane.b32.xlu0 %v50, 127
  %v52 = vpop.permute.xlu0 %51
  %54 = vrot.lane.b32.xlu0 %v48, 126
  %v55 = vpop.permute.xlu0 %54
  %57 = vrot.lane.b32.xlu0 %v50, 125
  %v58 = vpop.permute.xlu0 %57
  %60 = vrot.lane.b32.xlu0 %v48, 124
  %v61 = vpop.permute.xlu0 %60
  %63 = vrot.lane.b32.xlu0 %v50, 123
  %v64 = vpop.permute.xlu0 %63
  %66 = vrot.lane.b32.xlu0 %v48, 122
  %v67 = vpop.permute.xlu0 %66
  %69 = vrot.lane.b32.xlu0 %v50, 121
  %v70 = vpop.permute.xlu0 %69
  %vm72 = vcmask 1043456
  %v73 = vsel %vm72, %v48, %v52
  %v74 = vsel %vm72, %v55, %v58
  %v75 = vsel %vm72, %v61, %v64
  %v76 = vsel %vm72, %v67, %v70
  %78 = vrot.lane.b32.xlu0 %v39, 4
  %v79 = vpop.permute.xlu0 %78
  %v81 = vsel %vm45, 0.0, %v79
  %v82 = vsel %vm47, %v81, 0.0
  %v84 = vrot.slane %v82, 4
  %85 = vrot.lane.b32.xlu0 %v84, 127
  %v86 = vpop.permute.xlu0 %85
  %88 = vrot.lane.b32.xlu0 %v82, 126
  %v89 = vpop.permute.xlu0 %88
  %91 = vrot.lane.b32.xlu0 %v84, 125
  %v92 = vpop.permute.xlu0 %91
  %94 = vrot.lane.b32.xlu0 %v82, 124
  %v95 = vpop.permute.xlu0 %94
  %97 = vrot.lane.b32.xlu0 %v84, 123
  %v98 = vpop.permute.xlu0 %97
  %100 = vrot.lane.b32.xlu0 %v82, 122
  %v101 = vpop.permute.xlu0 %100
  %103 = vrot.lane.b32.xlu0 %v84, 121
  %v104 = vpop.permute.xlu0 %103
  %v106 = vsel %vm72, %v82, %v86
  %v107 = vsel %vm72, %v89, %v92
  %v108 = vsel %vm72, %v95, %v98
  %v109 = vsel %vm72, %v101, %v104
  %114 = vrot.lane.b32.xlu0 %v106, 33
  %v115 = vpop.permute.xlu0 %114
  %116 = vrot.lane.b32.xlu0 %v107, 33
  %v117 = vpop.permute.xlu0 %116
  %118 = vrot.lane.b32.xlu0 %v108, 33
  %v119 = vpop.permute.xlu0 %118
  %120 = vrot.lane.b32.xlu0 %v109, 33
  %v121 = vpop.permute.xlu0 %120
  %vm126 = vcmask 269312
  %v127 = vsel %vm126, %v73, %v115
  %v128 = vsel %vm126, %v74, %v117
  %v129 = vsel %vm126, %v75, %v119
  %v130 = vsel %vm126, %v76, %v121
  %vm131 = vcmask 261120
  %v133 = vsel %vm131, %v40, 0
  %135 = vmatprep.subr.mxu0 0.0
  %136 = vmatpush1.msra.mxu0 0.0
  %137 = vmatprep.subr.mxu0 0.0
  %138 = vmatpush1.msra.mxu0 0.0
  %139 = vmatprep.subr.mxu0 0.0
  %140 = vmatpush1.msra.mxu0 0.0
  %141 = vmatprep.subr.mxu0 0.0
  %142 = vmatpush1.msra.mxu0 0.0
  %143 = vmatprep.subr.mxu0 0.0
  %144 = vmatpush1.msra.mxu0 0.0
  %145 = vmatprep.subr.mxu0 0.0
  %146 = vmatpush1.msra.mxu0 0.0
  %147 = vmatprep.subr.mxu0 0.0
  %148 = vmatpush1.msra.mxu0 0.0
  %149 = vmatprep.subr.mxu0 0.0
  %150 = vmatpush1.msra.mxu0 0.0
  %151 = vmatprep.subr.mxu0 0.0
  %152 = vmatpush1.msra.mxu0 0.0
  %153 = vmatprep.subr.mxu0 0.0
  %154 = vmatpush1.msra.mxu0 0.0
  %155 = vmatprep.subr.mxu0 0.0
  %156 = vmatpush1.msra.mxu0 0.0
  %157 = vmatprep.subr.mxu0 0.0
  %158 = vmatpush1.msra.mxu0 0.0
  %159 = vmatprep.subr.mxu0 0.0
  %160 = vmatpush1.msra.mxu0 %v130
  %161 = vmatprep.subr.mxu0 0.0
  %162 = vmatpush1.msra.mxu0 %v129
  %163 = vmatprep.subr.mxu0 0.0
  %164 = vmatpush1.msra.mxu0 %v128
  %165 = vmatprep.subr.mxu0 0.0
  %166 = vmatpush1.msra.mxu0 %v127
  %167 = vmatprep.subr.mxu0 0.0
  %168 = vmatpush2.msra.mxu0 0.0
  %169 = vmatprep.subr.mxu0 0.0
  %170 = vmatpush2.msra.mxu0 0.0
  %171 = vmatprep.subr.mxu0 0.0
  %172 = vmatpush2.msra.mxu0 0.0
  %173 = vmatprep.subr.mxu0 0.0
  %174 = vmatpush2.msra.mxu0 0.0
  %175 = vmatprep.subr.mxu0 0.0
  %176 = vmatpush2.msra.mxu0 0.0
  %177 = vmatprep.subr.mxu0 0.0
  %178 = vmatpush2.msra.mxu0 0.0
  %179 = vmatprep.subr.mxu0 0.0
  %180 = vmatpush2.msra.mxu0 0.0
  %181 = vmatprep.subr.mxu0 0.0
  %182 = vmatpush2.msra.mxu0 0.0
  %183 = vmatprep.subr.mxu0 0.0
  %184 = vmatpush2.msra.mxu0 0.0
  %185 = vmatprep.subr.mxu0 0.0
  %186 = vmatpush2.msra.mxu0 0.0
  %187 = vmatprep.subr.mxu0 0.0
  %188 = vmatpush2.msra.mxu0 0.0
  %189 = vmatprep.subr.mxu0 0.0
  %190 = vmatpush2.msra.mxu0 0.0
  %191 = vmatprep.subr.mxu0 0.0
  %192 = vmatpush2.msra.mxu0 0.0
  %193 = vmatprep.subr.mxu0 0.0
  %194 = vmatpush2.msra.mxu0 0.0
  %195 = vmatprep.subr.mxu0 0.0
  %196 = vmatpush2.msra.mxu0 0.0
  %197 = vmatprep.subr.mxu0 0.0
  %198 = vmatpush2.msra.mxu0 0.0
  %199 = vmatprep.mubr.f32.mxu0 0.0
  %200 = vmatmul.mubr.f32.gmra.mxu0 %v133
  %v201 = vpop.f32.mrf.mxu0
  %v202 = vadd.f32 0.0, %v201
  %v203 = vpop.f32.mrf.mxu0
  %204 = vdwg.mxu0
  %v205 = vld [vmem:[%s2] sm:$0xff]
  %207 = vset.pattern.permute.xlu0 0
  %208 = vperm.xlu0 %207, %v205
  %v209 = vpop.permute.xlu0 %208
  %v211 = vmul.f32 %v202, %v209
  %v212 = vld [vmem:[%s3] sm:$0xff]
  %214 = vset.pattern.permute.xlu0 0
  %215 = vperm.xlu0 %214, %v212
  %v216 = vpop.permute.xlu0 %215
  %v218 = vadd.f32 %v211, %v216
  %v219 = vmax.f32 %v218, 0.0
  %221 = vrot.lane.b32.xlu0 %v219, 127
  %v222 = vpop.permute.xlu0 %221
  %v224 = vmax.f32 %v219, %v222
  %226 = vrot.lane.b32.xlu0 %v224, 127
  %v227 = vpop.permute.xlu0 %226
  %229 = vrot.lane.b32.xlu0 %v224, 126
  %v230 = vpop.permute.xlu0 %229
  %232 = vrot.lane.b32.xlu0 %v224, 125
  %v233 = vpop.permute.xlu0 %232
  %235 = vrot.lane.b32.xlu0 %v224, 124
  %v236 = vpop.permute.xlu0 %235
  %238 = vrot.lane.b32.xlu0 %v224, 123
  %v239 = vpop.permute.xlu0 %238
  %241 = vrot.lane.b32.xlu0 %v224, 122
  %v242 = vpop.permute.xlu0 %241
  %244 = vrot.lane.b32.xlu0 %v224, 121
  %v245 = vpop.permute.xlu0 %244
  %247 = vrot.lane.b32.xlu0 %v224, 120
  %v248 = vpop.permute.xlu0 %247
  %250 = vrot.lane.b32.xlu0 %v224, 119
  %v251 = vpop.permute.xlu0 %250
  %253 = vrot.lane.b32.xlu0 %v224, 118
  %v254 = vpop.permute.xlu0 %253
  %256 = vrot.lane.b32.xlu0 %v224, 117
  %v257 = vpop.permute.xlu0 %256
  %259 = vrot.lane.b32.xlu0 %v224, 116
  %v260 = vpop.permute.xlu0 %259
  %262 = vrot.lane.b32.xlu0 %v224, 115
  %v263 = vpop.permute.xlu0 %262
  %265 = vrot.lane.b32.xlu0 %v224, 114
  %v266 = vpop.permute.xlu0 %265
  %vm268 = vcmask 7168
  %v269 = vsel %vm268, %v219, %v224
  %vm270 = vcmask 15360
  %v271 = vsel %vm270, %v269, %v227
  %vm272 = vcmask 23552
  %v273 = vsel %vm272, %v271, %v230
  %v274 = vsel %vm45, %v273, %v233
  %vm275 = vcmask 39936
  %v276 = vsel %vm275, %v274, %v236
  %vm277 = vcmask 48128
  %v278 = vsel %vm277, %v276, %v239
  %vm279 = vcmask 56320
  %v280 = vsel %vm279, %v278, %v242
  %vm281 = vcmask 64512
  %v282 = vsel %vm281, %v280, %v245
  %vm283 = vcmask 72704
  %v284 = vsel %vm283, %v282, %v248
  %vm285 = vcmask 80896
  %v286 = vsel %vm285, %v284, %v251
  %vm287 = vcmask 89088
  %v288 = vsel %vm287, %v286, %v254
  %vm289 = vcmask 97280
  %v290 = vsel %vm289, %v288, %v257
  %vm291 = vcmask 105472
  %v292 = vsel %vm291, %v290, %v260
  %vm293 = vcmask 113664
  %v294 = vsel %vm293, %v292, %v263
  %vm295 = vcmask 121856
  %v296 = vsel %vm295, %v294, %v266
  %297 = vrot.lane.b32.xlu0 %v224, 113
  %v298 = vpop.permute.xlu0 %297
  %vm300 = vcmask 130048
  %v301 = vsel %vm300, %v296, %v298
  %302 = vrot.lane.b32.xlu0 %v219, 95
  %v303 = vpop.permute.xlu0 %302
  %305 = vrot.lane.b32.xlu0 %v224, 95
  %v306 = vpop.permute.xlu0 %305
  %308 = vrot.lane.b32.xlu0 %v224, 94
  %v309 = vpop.permute.xlu0 %308
  %311 = vrot.lane.b32.xlu0 %v224, 93
  %v312 = vpop.permute.xlu0 %311
  %314 = vrot.lane.b32.xlu0 %v224, 92
  %v315 = vpop.permute.xlu0 %314
  %317 = vrot.lane.b32.xlu0 %v224, 91
  %v318 = vpop.permute.xlu0 %317
  %320 = vrot.lane.b32.xlu0 %v224, 90
  %v321 = vpop.permute.xlu0 %320
  %323 = vrot.lane.b32.xlu0 %v224, 89
  %v324 = vpop.permute.xlu0 %323
  %326 = vrot.lane.b32.xlu0 %v224, 88
  %v327 = vpop.permute.xlu0 %326
  %329 = vrot.lane.b32.xlu0 %v224, 87
  %v330 = vpop.permute.xlu0 %329
  %332 = vrot.lane.b32.xlu0 %v224, 86
  %v333 = vpop.permute.xlu0 %332
  %335 = vrot.lane.b32.xlu0 %v224, 85
  %v336 = vpop.permute.xlu0 %335
  %338 = vrot.lane.b32.xlu0 %v224, 84
  %v339 = vpop.permute.xlu0 %338
  %341 = vrot.lane.b32.xlu0 %v224, 83
  %v342 = vpop.permute.xlu0 %341
  %344 = vrot.lane.b32.xlu0 %v224, 82
  %v345 = vpop.permute.xlu0 %344
  %347 = vrot.lane.b32.xlu0 %v224, 81
  %v348 = vpop.permute.xlu0 %347
  %v350 = vsel %vm268, %v303, %v306
  %v351 = vsel %vm270, %v350, %v309
  %v352 = vsel %vm272, %v351, %v312
  %v353 = vsel %vm45, %v352, %v315
  %v354 = vsel %vm275, %v353, %v318
  %v355 = vsel %vm277, %v354, %v321
  %v356 = vsel %vm279, %v355, %v324
  %v357 = vsel %vm281, %v356, %v327
  %v358 = vsel %vm283, %v357, %v330
  %v359 = vsel %vm285, %v358, %v333
  %v360 = vsel %vm287, %v359, %v336
  %v361 = vsel %vm289, %v360, %v339
  %v362 = vsel %vm291, %v361, %v342
  %v363 = vsel %vm293, %v362, %v345
  %v364 = vsel %vm295, %v363, %v348
  %365 = vrot.lane.b32.xlu0 %v224, 80
  %v366 = vpop.permute.xlu0 %365
  %v368 = vsel %vm300, %v364, %v366
  %v369 = vld [vmem:[%s4] sm:$0xff]
  %v370 = vld [vmem:[%s4 + $0x8] sm:$0xff]
  %372 = vrot.lane.b32.xlu0 %v301, 4
  %v373 = vpop.permute.xlu0 %372
  %v375 = vsel %vm45, 0.0, %v373
  %vm376 = vcmask 171008
  %v377 = vsel %vm376, %v375, 0.0
  %379 = vrot.lane.b32.xlu0 %v377, 127
  %v380 = vpop.permute.xlu0 %379
  %382 = vrot.lane.b32.xlu0 %v377, 126
  %v383 = vpop.permute.xlu0 %382
  %385 = vrot.lane.b32.xlu0 %v377, 125
  %v386 = vpop.permute.xlu0 %385
  %388 = vrot.lane.b32.xlu0 %v377, 124
  %v389 = vpop.permute.xlu0 %388
  %391 = vrot.lane.b32.xlu0 %v377, 123
  %v392 = vpop.permute.xlu0 %391
  %394 = vrot.lane.b32.xlu0 %v377, 122
  %v395 = vpop.permute.xlu0 %394
  %397 = vrot.lane.b32.xlu0 %v377, 121
  %v398 = vpop.permute.xlu0 %397
  %401 = vrot.lane.b32.xlu0 %v368, 4
  %v402 = vpop.permute.xlu0 %401
  %v404 = vsel %vm45, 0.0, %v402
  %v405 = vsel %vm376, %v404, 0.0
  %407 = vrot.lane.b32.xlu0 %v405, 127
  %v408 = vpop.permute.xlu0 %407
  %409 = vrot.lane.b32.xlu0 %v405, 126
  %v410 = vpop.permute.xlu0 %409
  %411 = vrot.lane.b32.xlu0 %v405, 125
  %v412 = vpop.permute.xlu0 %411
  %413 = vrot.lane.b32.xlu0 %v405, 124
  %v414 = vpop.permute.xlu0 %413
  %415 = vrot.lane.b32.xlu0 %v405, 123
  %v416 = vpop.permute.xlu0 %415
  %417 = vrot.lane.b32.xlu0 %v405, 122
  %v418 = vpop.permute.xlu0 %417
  %419 = vrot.lane.b32.xlu0 %v405, 121
  %v420 = vpop.permute.xlu0 %419
  %421 = vrot.lane.b32.xlu0 %v405, 18
  %v422 = vpop.permute.xlu0 %421
  %423 = vrot.lane.b32.xlu0 %v408, 18
  %v424 = vpop.permute.xlu0 %423
  %425 = vrot.lane.b32.xlu0 %v410, 18
  %v426 = vpop.permute.xlu0 %425
  %427 = vrot.lane.b32.xlu0 %v412, 18
  %v428 = vpop.permute.xlu0 %427
  %429 = vrot.lane.b32.xlu0 %v414, 18
  %v430 = vpop.permute.xlu0 %429
  %431 = vrot.lane.b32.xlu0 %v416, 18
  %v432 = vpop.permute.xlu0 %431
  %433 = vrot.lane.b32.xlu0 %v418, 18
  %v434 = vpop.permute.xlu0 %433
  %435 = vrot.lane.b32.xlu0 %v420, 18
  %v436 = vpop.permute.xlu0 %435
  %vm445 = vcmask 146432
  %v446 = vsel %vm445, %v377, %v422
  %v447 = vsel %vm445, %v380, %v424
  %v448 = vsel %vm445, %v383, %v426
  %v449 = vsel %vm445, %v386, %v428
  %v450 = vsel %vm445, %v389, %v430
  %v451 = vsel %vm445, %v392, %v432
  %v452 = vsel %vm445, %v395, %v434
  %v453 = vsel %vm445, %v398, %v436
  %vm454 = vcmask 523264
  %v456 = vsel %vm454, %v369, 0
  %v459 = vsel %vm454, %v370, 0
  %461 = vmatprep.subr.mxu0 0.0
  %462 = vmatpush1.msra.mxu0 0.0
  %463 = vmatprep.subr.mxu0 0.0
  %464 = vmatpush1.msra.mxu0 0.0
  %465 = vmatprep.subr.mxu0 0.0
  %466 = vmatpush1.msra.mxu0 0.0
  %467 = vmatprep.subr.mxu0 0.0
  %468 = vmatpush1.msra.mxu0 0.0
  %469 = vmatprep.subr.mxu0 0.0
  %470 = vmatpush1.msra.mxu0 0.0
  %471 = vmatprep.subr.mxu0 0.0
  %472 = vmatpush1.msra.mxu0 0.0
  %473 = vmatprep.subr.mxu0 0.0
  %474 = vmatpush1.msra.mxu0 0.0
  %475 = vmatprep.subr.mxu0 0.0
  %476 = vmatpush1.msra.mxu0 0.0
  %477 = vmatprep.subr.mxu0 0.0
  %478 = vmatpush1.msra.mxu0 %v453
  %479 = vmatprep.subr.mxu0 0.0
  %480 = vmatpush1.msra.mxu0 %v452
  %481 = vmatprep.subr.mxu0 0.0
  %482 = vmatpush1.msra.mxu0 %v451
  %483 = vmatprep.subr.mxu0 0.0
  %484 = vmatpush1.msra.mxu0 %v450
  %485 = vmatprep.subr.mxu0 0.0
  %486 = vmatpush1.msra.mxu0 %v449
  %487 = vmatprep.subr.mxu0 0.0
  %488 = vmatpush1.msra.mxu0 %v448
  %489 = vmatprep.subr.mxu0 0.0
  %490 = vmatpush1.msra.mxu0 %v447
  %491 = vmatprep.subr.mxu0 0.0
  %492 = vmatpush1.msra.mxu0 %v446
  %493 = vmatprep.subr.mxu0 0.0
  %494 = vmatpush2.msra.mxu0 0.0
  %495 = vmatprep.subr.mxu0 0.0
  %496 = vmatpush2.msra.mxu0 0.0
  %497 = vmatprep.subr.mxu0 0.0
  %498 = vmatpush2.msra.mxu0 0.0
  %499 = vmatprep.subr.mxu0 0.0
  %500 = vmatpush2.msra.mxu0 0.0
  %501 = vmatprep.subr.mxu0 0.0
  %502 = vmatpush2.msra.mxu0 0.0
  %503 = vmatprep.subr.mxu0 0.0
  %504 = vmatpush2.msra.mxu0 0.0
  %505 = vmatprep.subr.mxu0 0.0
  %506 = vmatpush2.msra.mxu0 0.0
  %507 = vmatprep.subr.mxu0 0.0
  %508 = vmatpush2.msra.mxu0 0.0
  %509 = vmatprep.subr.mxu0 0.0
  %510 = vmatpush2.msra.mxu0 0.0
  %511 = vmatprep.subr.mxu0 0.0
  %512 = vmatpush2.msra.mxu0 0.0
  %513 = vmatprep.subr.mxu0 0.0
  %514 = vmatpush2.msra.mxu0 0.0
  %515 = vmatprep.subr.mxu0 0.0
  %516 = vmatpush2.msra.mxu0 0.0
  %517 = vmatprep.subr.mxu0 0.0
  %518 = vmatpush2.msra.mxu0 0.0
  %519 = vmatprep.subr.mxu0 0.0
  %520 = vmatpush2.msra.mxu0 0.0
  %521 = vmatprep.subr.mxu0 0.0
  %522 = vmatpush2.msra.mxu0 0.0
  %523 = vmatprep.subr.mxu0 0.0
  %524 = vmatpush2.msra.mxu0 0.0
  %525 = vmatprep.mubr.f32.mxu0 0.0
  %526 = vmatmul.mubr.f32.gmra.mxu0 %v456
  %v527 = vpop.f32.mrf.mxu0
  %v528 = vadd.f32 0.0, %v527
  %v529 = vpop.f32.mrf.mxu0
  %530 = vmatprep.mubr.f32.mxu0 0.0
  %531 = vmatmul.mubr.f32.gmra.mxu0 %v459
  %v532 = vpop.f32.mrf.mxu0
  %v533 = vadd.f32 0.0, %v532
  %v534 = vpop.f32.mrf.mxu0
  %535 = vdwg.mxu0
  %v536 = vld [vmem:[%s5] sm:$0xff]
  %v537 = vld [vmem:[%s5 + $0x8] sm:$0xff]
  %539 = vset.pattern.permute.xlu0 0
  %540 = vperm.xlu0 %539, %v536
  %v541 = vpop.permute.xlu0 %540
  %544 = vset.pattern.permute.xlu0 0
  %545 = vperm.xlu0 %544, %v537
  %v546 = vpop.permute.xlu0 %545
  %v548 = vmul.f32 %v528, %v541
  %v549 = vmul.f32 %v533, %v546
  %v550 = vld [vmem:[%s6] sm:$0xff]
  %v551 = vld [vmem:[%s6 + $0x8] sm:$0xff]
  %553 = vset.pattern.permute.xlu0 0
  %554 = vperm.xlu0 %553, %v550
  %v555 = vpop.permute.xlu0 %554
  %558 = vset.pattern.permute.xlu0 0
  %559 = vperm.xlu0 %558, %v551
  %v560 = vpop.permute.xlu0 %559
  %v562 = vadd.f32 %v548, %v555
  %v563 = vadd.f32 %v549, %v560
  %v564 = vmax.f32 %v562, 0.0
  %v565 = vmax.f32 %v563, 0.0
  %568 = vrot.lane.b32.xlu0 %v564, 127
  %v569 = vpop.permute.xlu0 %568
  %570 = vrot.lane.b32.xlu0 %v565, 127
  %v571 = vpop.permute.xlu0 %570
  %v574 = vmax.f32 %v564, %v569
  %v575 = vmax.f32 %v565, %v571
  %578 = vrot.lane.b32.xlu0 %v574, 127
  %v579 = vpop.permute.xlu0 %578
  %580 = vrot.lane.b32.xlu0 %v575, 127
  %v581 = vpop.permute.xlu0 %580
  %584 = vrot.lane.b32.xlu0 %v574, 126
  %v585 = vpop.permute.xlu0 %584
  %586 = vrot.lane.b32.xlu0 %v575, 126
  %v587 = vpop.permute.xlu0 %586
  %590 = vrot.lane.b32.xlu0 %v574, 125
  %v591 = vpop.permute.xlu0 %590
  %592 = vrot.lane.b32.xlu0 %v575, 125
  %v593 = vpop.permute.xlu0 %592
  %596 = vrot.lane.b32.xlu0 %v574, 124
  %v597 = vpop.permute.xlu0 %596
  %598 = vrot.lane.b32.xlu0 %v575, 124
  %v599 = vpop.permute.xlu0 %598
  %602 = vrot.lane.b32.xlu0 %v574, 123
  %v603 = vpop.permute.xlu0 %602
  %604 = vrot.lane.b32.xlu0 %v575, 123
  %v605 = vpop.permute.xlu0 %604
  %608 = vrot.lane.b32.xlu0 %v574, 122
  %v609 = vpop.permute.xlu0 %608
  %610 = vrot.lane.b32.xlu0 %v575, 122
  %v611 = vpop.permute.xlu0 %610
  %614 = vrot.lane.b32.xlu0 %v574, 121
  %v615 = vpop.permute.xlu0 %614
  %616 = vrot.lane.b32.xlu0 %v575, 121
  %v617 = vpop.permute.xlu0 %616
  %620 = vrot.lane.b32.xlu0 %v564, 120
  %v621 = vpop.permute.xlu0 %620
  %622 = vrot.lane.b32.xlu0 %v565, 120
  %v623 = vpop.permute.xlu0 %622
  %v626 = vsel %vm268, %v564, %v574
  %v627 = vsel %vm268, %v565, %v575
  %v628 = vsel %vm270, %v626, %v579
  %v629 = vsel %vm270, %v627, %v581
  %v630 = vsel %vm272, %v628, %v585
  %v631 = vsel %vm272, %v629, %v587
  %v632 = vsel %vm45, %v630, %v591
  %v633 = vsel %vm45, %v631, %v593
  %v634 = vsel %vm275, %v632, %v597
  %v635 = vsel %vm275, %v633, %v599
  %v636 = vsel %vm277, %v634, %v603
  %v637 = vsel %vm277, %v635, %v605
  %v638 = vsel %vm279, %v636, %v609
  %v639 = vsel %vm279, %v637, %v611
  %v640 = vsel %vm281, %v638, %v615
  %v641 = vsel %vm281, %v639, %v617
  %v642 = vsel %vm283, %v640, %v621
  %v643 = vsel %vm283, %v641, %v623
  %644 = vrot.lane.b32.xlu0 %v564, 110
  %v645 = vpop.permute.xlu0 %644
  %646 = vrot.lane.b32.xlu0 %v565, 110
  %v647 = vpop.permute.xlu0 %646
  %650 = vrot.lane.b32.xlu0 %v574, 110
  %v651 = vpop.permute.xlu0 %650
  %652 = vrot.lane.b32.xlu0 %v575, 110
  %v653 = vpop.permute.xlu0 %652
  %656 = vrot.lane.b32.xlu0 %v574, 109
  %v657 = vpop.permute.xlu0 %656
  %658 = vrot.lane.b32.xlu0 %v575, 109
  %v659 = vpop.permute.xlu0 %658
  %662 = vrot.lane.b32.xlu0 %v574, 108
  %v663 = vpop.permute.xlu0 %662
  %664 = vrot.lane.b32.xlu0 %v575, 108
  %v665 = vpop.permute.xlu0 %664
  %668 = vrot.lane.b32.xlu0 %v574, 107
  %v669 = vpop.permute.xlu0 %668
  %670 = vrot.lane.b32.xlu0 %v575, 107
  %v671 = vpop.permute.xlu0 %670
  %674 = vrot.lane.b32.xlu0 %v574, 106
  %v675 = vpop.permute.xlu0 %674
  %676 = vrot.lane.b32.xlu0 %v575, 106
  %v677 = vpop.permute.xlu0 %676
  %680 = vrot.lane.b32.xlu0 %v574, 105
  %v681 = vpop.permute.xlu0 %680
  %682 = vrot.lane.b32.xlu0 %v575, 105
  %v683 = vpop.permute.xlu0 %682
  %686 = vrot.lane.b32.xlu0 %v574, 104
  %v687 = vpop.permute.xlu0 %686
  %688 = vrot.lane.b32.xlu0 %v575, 104
  %v689 = vpop.permute.xlu0 %688
  %692 = vrot.lane.b32.xlu0 %v574, 103
  %v693 = vpop.permute.xlu0 %692
  %694 = vrot.lane.b32.xlu0 %v575, 103
  %v695 = vpop.permute.xlu0 %694
  %698 = vrot.lane.b32.xlu0 %v564, 102
  %v699 = vpop.permute.xlu0 %698
  %700 = vrot.lane.b32.xlu0 %v565, 102
  %v701 = vpop.permute.xlu0 %700
  %v704 = vsel %vm268, %v645, %v651
  %v705 = vsel %vm268, %v647, %v653
  %v706 = vsel %vm270, %v704, %v657
  %v707 = vsel %vm270, %v705, %v659
  %v708 = vsel %vm272, %v706, %v663
  %v709 = vsel %vm272, %v707, %v665
  %v710 = vsel %vm45, %v708, %v669
  %v711 = vsel %vm45, %v709, %v671
  %v712 = vsel %vm275, %v710, %v675
  %v713 = vsel %vm275, %v711, %v677
  %v714 = vsel %vm277, %v712, %v681
  %v715 = vsel %vm277, %v713, %v683
  %v716 = vsel %vm279, %v714, %v687
  %v717 = vsel %vm279, %v715, %v689
  %v718 = vsel %vm281, %v716, %v693
  %v719 = vsel %vm281, %v717, %v695
  %v720 = vsel %vm283, %v718, %v699
  %v721 = vsel %vm283, %v719, %v701
  %v722 = vld [vmem:[%s7] sm:$0xff]
  %v723 = vld [vmem:[%s7 + $0x8] sm:$0xff]
  %726 = vrot.lane.b32.xlu0 %v642, 4
  %v727 = vpop.permute.xlu0 %726
  %728 = vrot.lane.b32.xlu0 %v643, 4
  %v729 = vpop.permute.xlu0 %728
  %v732 = vsel %vm45, 0.0, %v727
  %v733 = vsel %vm45, 0.0, %v729
  %v734 = vsel %vm293, %v732, 0.0
  %v735 = vsel %vm293, %v733, 0.0
  %738 = vrot.lane.b32.xlu0 %v734, 127
  %v739 = vpop.permute.xlu0 %738
  %740 = vrot.lane.b32.xlu0 %v735, 127
  %v741 = vpop.permute.xlu0 %740
  %744 = vrot.lane.b32.xlu0 %v734, 126
  %v745 = vpop.permute.xlu0 %744
  %746 = vrot.lane.b32.xlu0 %v735, 126
  %v747 = vpop.permute.xlu0 %746
  %750 = vrot.lane.b32.xlu0 %v734, 125
  %v751 = vpop.permute.xlu0 %750
  %752 = vrot.lane.b32.xlu0 %v735, 125
  %v753 = vpop.permute.xlu0 %752
  %756 = vrot.lane.b32.xlu0 %v734, 124
  %v757 = vpop.permute.xlu0 %756
  %758 = vrot.lane.b32.xlu0 %v735, 124
  %v759 = vpop.permute.xlu0 %758
  %762 = vrot.lane.b32.xlu0 %v734, 123
  %v763 = vpop.permute.xlu0 %762
  %764 = vrot.lane.b32.xlu0 %v735, 123
  %v765 = vpop.permute.xlu0 %764
  %768 = vrot.lane.b32.xlu0 %v734, 122
  %v769 = vpop.permute.xlu0 %768
  %770 = vrot.lane.b32.xlu0 %v735, 122
  %v771 = vpop.permute.xlu0 %770
  %774 = vrot.lane.b32.xlu0 %v734, 121
  %v775 = vpop.permute.xlu0 %774
  %776 = vrot.lane.b32.xlu0 %v735, 121
  %v777 = vpop.permute.xlu0 %776
  %782 = vrot.lane.b32.xlu0 %v720, 4
  %v783 = vpop.permute.xlu0 %782
  %784 = vrot.lane.b32.xlu0 %v721, 4
  %v785 = vpop.permute.xlu0 %784
  %v788 = vsel %vm45, 0.0, %v783
  %v789 = vsel %vm45, 0.0, %v785
  %v790 = vsel %vm293, %v788, 0.0
  %v791 = vsel %vm293, %v789, 0.0
  %794 = vrot.lane.b32.xlu0 %v790, 127
  %v795 = vpop.permute.xlu0 %794
  %796 = vrot.lane.b32.xlu0 %v791, 127
  %v797 = vpop.permute.xlu0 %796
  %798 = vrot.lane.b32.xlu0 %v790, 126
  %v799 = vpop.permute.xlu0 %798
  %800 = vrot.lane.b32.xlu0 %v791, 126
  %v801 = vpop.permute.xlu0 %800
  %802 = vrot.lane.b32.xlu0 %v790, 125
  %v803 = vpop.permute.xlu0 %802
  %804 = vrot.lane.b32.xlu0 %v791, 125
  %v805 = vpop.permute.xlu0 %804
  %806 = vrot.lane.b32.xlu0 %v790, 124
  %v807 = vpop.permute.xlu0 %806
  %808 = vrot.lane.b32.xlu0 %v791, 124
  %v809 = vpop.permute.xlu0 %808
  %810 = vrot.lane.b32.xlu0 %v790, 123
  %v811 = vpop.permute.xlu0 %810
  %812 = vrot.lane.b32.xlu0 %v791, 123
  %v813 = vpop.permute.xlu0 %812
  %814 = vrot.lane.b32.xlu0 %v790, 122
  %v815 = vpop.permute.xlu0 %814
  %816 = vrot.lane.b32.xlu0 %v791, 122
  %v817 = vpop.permute.xlu0 %816
  %818 = vrot.lane.b32.xlu0 %v790, 121
  %v819 = vpop.permute.xlu0 %818
  %820 = vrot.lane.b32.xlu0 %v791, 121
  %v821 = vpop.permute.xlu0 %820
  %822 = vrot.lane.b32.xlu0 %v790, 11
  %v823 = vpop.permute.xlu0 %822
  %824 = vrot.lane.b32.xlu0 %v791, 11
  %v825 = vpop.permute.xlu0 %824
  %826 = vrot.lane.b32.xlu0 %v795, 11
  %v827 = vpop.permute.xlu0 %826
  %828 = vrot.lane.b32.xlu0 %v797, 11
  %v829 = vpop.permute.xlu0 %828
  %830 = vrot.lane.b32.xlu0 %v799, 11
  %v831 = vpop.permute.xlu0 %830
  %832 = vrot.lane.b32.xlu0 %v801, 11
  %v833 = vpop.permute.xlu0 %832
  %834 = vrot.lane.b32.xlu0 %v803, 11
  %v835 = vpop.permute.xlu0 %834
  %836 = vrot.lane.b32.xlu0 %v805, 11
  %v837 = vpop.permute.xlu0 %836
  %838 = vrot.lane.b32.xlu0 %v807, 11
  %v839 = vpop.permute.xlu0 %838
  %840 = vrot.lane.b32.xlu0 %v809, 11
  %v841 = vpop.permute.xlu0 %840
  %842 = vrot.lane.b32.xlu0 %v811, 11
  %v843 = vpop.permute.xlu0 %842
  %844 = vrot.lane.b32.xlu0 %v813, 11
  %v845 = vpop.permute.xlu0 %844
  %846 = vrot.lane.b32.xlu0 %v815, 11
  %v847 = vpop.permute.xlu0 %846
  %848 = vrot.lane.b32.xlu0 %v817, 11
  %v849 = vpop.permute.xlu0 %848
  %850 = vrot.lane.b32.xlu0 %v819, 11
  %v851 = vpop.permute.xlu0 %850
  %852 = vrot.lane.b32.xlu0 %v821, 11
  %v853 = vpop.permute.xlu0 %852
  %v870 = vsel %vm287, %v734, %v823
  %v871 = vsel %vm287, %v735, %v825
  %v872 = vsel %vm287, %v739, %v827
  %v873 = vsel %vm287, %v741, %v829
  %v874 = vsel %vm287, %v745, %v831
  %v875 = vsel %vm287, %v747, %v833
  %v876 = vsel %vm287, %v751, %v835
  %v877 = vsel %vm287, %v753, %v837
  %v878 = vsel %vm287, %v757, %v839
  %v879 = vsel %vm287, %v759, %v841
  %v880 = vsel %vm287, %v763, %v843
  %v881 = vsel %vm287, %v765, %v845
  %v882 = vsel %vm287, %v769, %v847
  %v883 = vsel %vm287, %v771, %v849
  %v884 = vsel %vm287, %v775, %v851
  %v885 = vsel %vm287, %v777, %v853
  %886 = vmatprep.subr.mxu0 0.0
  %887 = vmatpush1.msra.mxu0 %v885
  %888 = vmatprep.subr.mxu0 0.0
  %889 = vmatpush1.msra.mxu0 %v884
  %890 = vmatprep.subr.mxu0 0.0
  %891 = vmatpush1.msra.mxu0 %v883
  %892 = vmatprep.subr.mxu0 0.0
  %893 = vmatpush1.msra.mxu0 %v882
  %894 = vmatprep.subr.mxu0 0.0
  %895 = vmatpush1.msra.mxu0 %v881
  %896 = vmatprep.subr.mxu0 0.0
  %897 = vmatpush1.msra.mxu0 %v880
  %898 = vmatprep.subr.mxu0 0.0
  %899 = vmatpush1.msra.mxu0 %v879
  %900 = vmatprep.subr.mxu0 0.0
  %901 = vmatpush1.msra.mxu0 %v878
  %902 = vmatprep.subr.mxu0 0.0
  %903 = vmatpush1.msra.mxu0 %v877
  %904 = vmatprep.subr.mxu0 0.0
  %905 = vmatpush1.msra.mxu0 %v876
  %906 = vmatprep.subr.mxu0 0.0
  %907 = vmatpush1.msra.mxu0 %v875
  %908 = vmatprep.subr.mxu0 0.0
  %909 = vmatpush1.msra.mxu0 %v874
  %910 = vmatprep.subr.mxu0 0.0
  %911 = vmatpush1.msra.mxu0 %v873
  %912 = vmatprep.subr.mxu0 0.0
  %913 = vmatpush1.msra.mxu0 %v872
  %914 = vmatprep.subr.mxu0 0.0
  %915 = vmatpush1.msra.mxu0 %v871
  %916 = vmatprep.subr.mxu0 0.0
  %917 = vmatpush1.msra.mxu0 %v870
  %918 = vmatprep.subr.mxu0 0.0
  %919 = vmatpush2.msra.mxu0 0.0
  %920 = vmatprep.subr.mxu0 0.0
  %921 = vmatpush2.msra.mxu0 0.0
  %922 = vmatprep.subr.mxu0 0.0
  %923 = vmatpush2.msra.mxu0 0.0
  %924 = vmatprep.subr.mxu0 0.0
  %925 = vmatpush2.msra.mxu0 0.0
  %926 = vmatprep.subr.mxu0 0.0
  %927 = vmatpush2.msra.mxu0 0.0
  %928 = vmatprep.subr.mxu0 0.0
  %929 = vmatpush2.msra.mxu0 0.0
  %930 = vmatprep.subr.mxu0 0.0
  %931 = vmatpush2.msra.mxu0 0.0
  %932 = vmatprep.subr.mxu0 0.0
  %933 = vmatpush2.msra.mxu0 0.0
  %934 = vmatprep.subr.mxu0 0.0
  %935 = vmatpush2.msra.mxu0 0.0
  %936 = vmatprep.subr.mxu0 0.0
  %937 = vmatpush2.msra.mxu0 0.0
  %938 = vmatprep.subr.mxu0 0.0
  %939 = vmatpush2.msra.mxu0 0.0
  %940 = vmatprep.subr.mxu0 0.0
  %941 = vmatpush2.msra.mxu0 0.0
  %942 = vmatprep.subr.mxu0 0.0
  %943 = vmatpush2.msra.mxu0 0.0
  %944 = vmatprep.subr.mxu0 0.0
  %945 = vmatpush2.msra.mxu0 0.0
  %946 = vmatprep.subr.mxu0 0.0
  %947 = vmatpush2.msra.mxu0 0.0
  %948 = vmatprep.subr.mxu0 0.0
  %949 = vmatpush2.msra.mxu0 0.0
  %950 = vmatprep.mubr.f32.mxu0 0.0
  %951 = vmatmul.mubr.f32.gmra.mxu0 %v722
  %v952 = vpop.f32.mrf.mxu0
  %v953 = vadd.f32 0.0, %v952
  %v954 = vpop.f32.mrf.mxu0
  %955 = vmatprep.mubr.f32.mxu0 0.0
  %956 = vmatmul.mubr.f32.gmra.mxu0 %v723
  %v957 = vpop.f32.mrf.mxu0
  %v958 = vadd.f32 0.0, %v957
  %v959 = vpop.f32.mrf.mxu0
  %960 = vdwg.mxu0
  %v961 = vld [vmem:[%s8] sm:$0xff]
  %v962 = vld [vmem:[%s8 + $0x8] sm:$0xff]
  %964 = vset.pattern.permute.xlu0 0
  %965 = vperm.xlu0 %964, %v961
  %v966 = vpop.permute.xlu0 %965
  %969 = vset.pattern.permute.xlu0 0
  %970 = vperm.xlu0 %969, %v962
  %v971 = vpop.permute.xlu0 %970
  %v973 = vmul.f32 %v953, %v966
  %v974 = vmul.f32 %v958, %v971
  %v975 = vld [vmem:[%s9] sm:$0xff]
  %v976 = vld [vmem:[%s9 + $0x8] sm:$0xff]
  %978 = vset.pattern.permute.xlu0 0
  %979 = vperm.xlu0 %978, %v975
  %v980 = vpop.permute.xlu0 %979
  %983 = vset.pattern.permute.xlu0 0
  %984 = vperm.xlu0 %983, %v976
  %v985 = vpop.permute.xlu0 %984
  %v987 = vadd.f32 %v973, %v980
  %v988 = vadd.f32 %v974, %v985
  %v989 = vmax.f32 %v987, 0.0
  %v990 = vmax.f32 %v988, 0.0
  %993 = vrot.lane.b32.xlu0 %v989, 127
  %v994 = vpop.permute.xlu0 %993
  %995 = vrot.lane.b32.xlu0 %v990, 127
  %v996 = vpop.permute.xlu0 %995
  %v999 = vmax.f32 %v989, %v994
  %v1000 = vmax.f32 %v990, %v996
  %1003 = vrot.lane.b32.xlu0 %v999, 127
  %v1004 = vpop.permute.xlu0 %1003
  %1005 = vrot.lane.b32.xlu0 %v1000, 127
  %v1006 = vpop.permute.xlu0 %1005
  %1009 = vrot.lane.b32.xlu0 %v999, 126
  %v1010 = vpop.permute.xlu0 %1009
  %1011 = vrot.lane.b32.xlu0 %v1000, 126
  %v1012 = vpop.permute.xlu0 %1011
  %1015 = vrot.lane.b32.xlu0 %v999, 125
  %v1016 = vpop.permute.xlu0 %1015
  %1017 = vrot.lane.b32.xlu0 %v1000, 125
  %v1018 = vpop.permute.xlu0 %1017
  %1021 = vrot.lane.b32.xlu0 %v999, 124
  %v1022 = vpop.permute.xlu0 %1021
  %1023 = vrot.lane.b32.xlu0 %v1000, 124
  %v1024 = vpop.permute.xlu0 %1023
  %v1027 = vsel %vm268, %v989, %v999
  %v1028 = vsel %vm268, %v990, %v1000
  %v1029 = vsel %vm270, %v1027, %v1004
  %v1030 = vsel %vm270, %v1028, %v1006
  %v1031 = vsel %vm272, %v1029, %v1010
  %v1032 = vsel %vm272, %v1030, %v1012
  %v1033 = vsel %vm45, %v1031, %v1016
  %v1034 = vsel %vm45, %v1032, %v1018
  %v1035 = vsel %vm275, %v1033, %v1022
  %v1036 = vsel %vm275, %v1034, %v1024
  %1037 = vrot.lane.b32.xlu0 %v989, 117
  %v1038 = vpop.permute.xlu0 %1037
  %1039 = vrot.lane.b32.xlu0 %v990, 117
  %v1040 = vpop.permute.xlu0 %1039
  %1043 = vrot.lane.b32.xlu0 %v999, 117
  %v1044 = vpop.permute.xlu0 %1043
  %1045 = vrot.lane.b32.xlu0 %v1000, 117
  %v1046 = vpop.permute.xlu0 %1045
  %1049 = vrot.lane.b32.xlu0 %v999, 116
  %v1050 = vpop.permute.xlu0 %1049
  %1051 = vrot.lane.b32.xlu0 %v1000, 116
  %v1052 = vpop.permute.xlu0 %1051
  %1055 = vrot.lane.b32.xlu0 %v999, 115
  %v1056 = vpop.permute.xlu0 %1055
  %1057 = vrot.lane.b32.xlu0 %v1000, 115
  %v1058 = vpop.permute.xlu0 %1057
  %1061 = vrot.lane.b32.xlu0 %v999, 114
  %v1062 = vpop.permute.xlu0 %1061
  %1063 = vrot.lane.b32.xlu0 %v1000, 114
  %v1064 = vpop.permute.xlu0 %1063
  %1067 = vrot.lane.b32.xlu0 %v999, 113
  %v1068 = vpop.permute.xlu0 %1067
  %1069 = vrot.lane.b32.xlu0 %v1000, 113
  %v1070 = vpop.permute.xlu0 %1069
  %v1073 = vsel %vm268, %v1038, %v1044
  %v1074 = vsel %vm268, %v1040, %v1046
  %v1075 = vsel %vm270, %v1073, %v1050
  %v1076 = vsel %vm270, %v1074, %v1052
  %v1077 = vsel %vm272, %v1075, %v1056
  %v1078 = vsel %vm272, %v1076, %v1058
  %v1079 = vsel %vm45, %v1077, %v1062
  %v1080 = vsel %vm45, %v1078, %v1064
  %v1081 = vsel %vm275, %v1079, %v1068
  %v1082 = vsel %vm275, %v1080, %v1070
  %1083 = vst.msk [vmem:[%s10] sm:$0xff] %vm277, %v1035
  %1084 = vst.msk [vmem:[%s10 + $0x8] sm:$0xff] %vm277, %v1036
  %v1085 = vsel %vm272, %v1035, 0.0
  %1086 = vadd.xlane.f32.xlu0 %v1085
  %v1087 = vpop.xlane.xlu0 %1086
  %v1088 = vsel %vm272, %v1036, 0.0
  %1089 = vadd.xlane.f32.xlu0 %v1088
  %v1090 = vpop.xlane.xlu0 %1089
  %v1091 = vrcp.pop 3.0
  %v1092 = vmul.f32 %v1087, %v1091
  %v1093 = vmul.f32 %v1090, %v1091
  %1096 = vrot.lane.b32.xlu0 %v1035, 125
  %v1097 = vpop.permute.xlu0 %1096
  %1098 = vrot.lane.b32.xlu0 %v1036, 125
  %v1099 = vpop.permute.xlu0 %1098
  %v1102 = vsel %vm272, %v1097, 0.0
  %1103 = vadd.xlane.f32.xlu0 %v1102
  %v1104 = vpop.xlane.xlu0 %1103
  %v1105 = vsel %vm272, %v1099, 0.0
  %1106 = vadd.xlane.f32.xlu0 %v1105
  %v1107 = vpop.xlane.xlu0 %1106
  %v1108 = vmul.f32 %v1104, %v1091
  %v1109 = vmul.f32 %v1107, %v1091
  %v1110 = vsel %vm268, %v1092, %v1108
  %v1111 = vsel %vm268, %v1093, %v1109
  %1112 = vst.msk [vmem:[%s11] sm:$0xff] %vm270, %v1110
  %1113 = vst.msk [vmem:[%s11 + $0x8] sm:$0xff] %vm270, %v1111
  %s1114 = scalar_lea.vmem %s10, 16
  %1115 = vst.msk [vmem:[%s1114] sm:$0xff] %vm277, %v1081
  %1116 = vst.msk [vmem:[%s1114 + $0x8] sm:$0xff] %vm277, %v1082
  %v1117 = vsel %vm272, %v1081, 0.0
  %1118 = vadd.xlane.f32.xlu0 %v1117
  %v1119 = vpop.xlane.xlu0 %1118
  %v1120 = vsel %vm272, %v1082, 0.0
  %1121 = vadd.xlane.f32.xlu0 %v1120
  %v1122 = vpop.xlane.xlu0 %1121
  %v1123 = vmul.f32 %v1119, %v1091
  %v1124 = vmul.f32 %v1122, %v1091
  %1127 = vrot.lane.b32.xlu0 %v1081, 125
  %v1128 = vpop.permute.xlu0 %1127
  %1129 = vrot.lane.b32.xlu0 %v1082, 125
  %v1130 = vpop.permute.xlu0 %1129
  %v1133 = vsel %vm272, %v1128, 0.0
  %1134 = vadd.xlane.f32.xlu0 %v1133
  %v1135 = vpop.xlane.xlu0 %1134
  %v1136 = vsel %vm272, %v1130, 0.0
  %1137 = vadd.xlane.f32.xlu0 %v1136
  %v1138 = vpop.xlane.xlu0 %1137
  %v1139 = vmul.f32 %v1135, %v1091
  %v1140 = vmul.f32 %v1138, %v1091
  %v1141 = vsel %vm268, %v1123, %v1139
  %v1142 = vsel %vm268, %v1124, %v1140
  %s1143 = scalar_lea.vmem %s11, 16
  %1144 = vst.msk [vmem:[%s1143] sm:$0xff] %vm270, %v1141
  %1145 = vst.msk [vmem:[%s1143 + $0x8] sm:$0xff] %vm270, %v1142
  // Predicated region
  $region42: #{tpu_custom_call.1} parent=0 // pred_check
    _
  $region43: #{tpu_custom_call.1} parent=0 // pred_check_branch
    %1147 = sbr.rel (0) target = $region45
  $region44: #{tpu_custom_call.1} parent=0 // pred_region
    _
  $region45: #{tpu_custom_call.1} parent=0 // pred_fallthru
    _
  // Predicated region
  $region46: #{tpu_custom_call.1} parent=0 // pred_check
    _
  $region47: #{tpu_custom_call.1} parent=0 // pred_check_branch
    %1149 = sbr.rel (0) target = $region49
  $region48: #{tpu_custom_call.1} parent=0 // pred_region
    _
  $region49: #{tpu_custom_call.1} parent=0 // pred_fallthru
    _
  // Predicated region
  $region50: #{tpu_custom_call.1} parent=0 // pred_check
    _
  $region51: #{tpu_custom_call.1} parent=0 // pred_check_branch
    %1151 = sbr.rel (0) target = $region53
  $region52: #{tpu_custom_call.1} parent=0 // pred_region
    _
  $region53: #{tpu_custom_call.1} parent=0 // pred_fallthru
    _
  // Predicated region
  $region54: #{tpu_custom_call.1} parent=0 // pred_check
    _
  $region55: #{tpu_custom_call.1} parent=0 // pred_check_branch
    %1153 = sbr.rel (0) target = $region57
  $region56: #{tpu_custom_call.1} parent=0 // pred_region
    _
  $region57: #{tpu_custom_call.1} parent=0 // pred_fallthru
    _

</llo_original>
